<compile_context>
chip_gen: v7x
topology: tpu7x:2x2x1
jax: 0.10.0
libtpu: 0.0.40
codegen_flags: <defaults>
</compile_context>

<pallas_src>
import jax
import jax.numpy as jnp
from jax.experimental import pallas as pl
from jax.experimental.pallas import tpu as pltpu

AWQ_INV_ORDER = (0, 4, 1, 5, 2, 6, 3, 7)   # nibble index holding column 8*j + r
PACK = 8                                   # 32 // w_bit, w_bit == 4


def _round_up(x, m):
    return (x + m - 1) // m * m


def _awq_gemm_kernel(x_ref, qw_ref, qz_ref, s_ref, b_ref, o_ref):
    # x_ref : (TM, K)         bfloat16  activations
    # qw_ref: (K, NTp)        int32     packed weights   (NTp = N_tile // 8)
    # qz_ref: (K//G, NTp)     int32     packed zero points
    # s_ref : (8, K//G, NTp)  bfloat16  scales, nibble-plane-major
    # b_ref : (8, NTp)        float32   bias, nibble-plane-major
    # o_ref : (8, TM, NTp)    float32   output, nibble-plane-major
    _, k = x_ref.shape
    ntp = qw_ref.shape[1]
    n_groups = qz_ref.shape[0]
    g = k // n_groups

    x = x_ref[...]                                      # (TM, K)      bf16
    qw = qw_ref[...].reshape(n_groups, g, ntp)          # (NG, G, NTp) int32
    qz = qz_ref[...]                                    # (NG, NTp)    int32
    s = s_ref[...].astype(jnp.float32)                  # (8, NG, NTp) f32
    b = b_ref[...]                                      # (8, NTp)     f32

    # Static 8-way unroll over nibble planes; each plane is a single full-K
    # MXU contraction (TM, K) x (K, NTp) -> (TM, NTp).
    for r in range(PACK):
        shift = 4 * AWQ_INV_ORDER[r]
        w4 = (qw >> shift) & 0xF                        # (NG, G, NTp) int32
        z4 = (qz >> shift) & 0xF                        # (NG, NTp)    int32
        w_deq = ((w4 - z4[:, None, :]).astype(jnp.float32)
                 * s[r][:, None, :])                    # (NG, G, NTp) f32
        w_deq = w_deq.astype(jnp.bfloat16).reshape(k, ntp)
        acc = jnp.dot(x, w_deq, preferred_element_type=jnp.float32)  # (TM, NTp)
        o_ref[r] = acc + b[r:r + 1, :]


def wqlinear_gemm_forward(x, qweight, qzeros, scales, bias, group_size,
                          *, tile_m=256, tile_n=2048):
    *lead, k = x.shape
    n_packed = qweight.shape[1]
    n = n_packed * PACK
    n_groups = k // group_size
    assert qweight.shape == (k, n_packed)
    assert qzeros.shape == (n_groups, n_packed)
    assert scales.shape == (n_groups, n)

    # Flatten batch dims; cast activations to bf16 once (MXU input dtype).
    x2 = x.reshape(-1, k).astype(jnp.bfloat16)
    m = x2.shape[0]

    # M tiling with padding (real batch*seq need not divide the MXU tile).
    tm = min(tile_m, _round_up(max(m, 1), 8))
    m_pad = _round_up(max(m, 1), tm)
    if m_pad != m:
        x2 = jnp.pad(x2, ((0, m_pad - m), (0, 0)))

    # N tiling: 2048-column slabs (256-lane-wide nibble planes) for wide
    # layers, otherwise the whole width (small demo / odd widths).
    tn = tile_n if (n > tile_n and n % tile_n == 0) else n
    tnp = tn // PACK

    # scales -> nibble-plane-major bf16: s3[r, g, j] = scales[g, 8*j + r]
    s3 = (scales.astype(jnp.bfloat16)
          .reshape(n_groups, n_packed, PACK).transpose(2, 0, 1))
    # bias   -> nibble-plane-major f32:  b3[r, j] = bias[8*j + r]
    b_full = bias if bias is not None else jnp.zeros((n,), jnp.float32)
    b3 = b_full.astype(jnp.float32).reshape(n_packed, PACK).T

    grid = (n // tn, m_pad // tm)   # M innermost: weight tile reused across it
    out3 = pl.pallas_call(
        _awq_gemm_kernel,
        out_shape=jax.ShapeDtypeStruct((PACK, m_pad, n_packed), jnp.float32),
        grid_spec=pltpu.PrefetchScalarGridSpec(
            num_scalar_prefetch=0,
            grid=grid,
            in_specs=[
                pl.BlockSpec((tm, k), lambda ni, mi: (mi, 0)),
                pl.BlockSpec((k, tnp), lambda ni, mi: (0, ni)),
                pl.BlockSpec((n_groups, tnp), lambda ni, mi: (0, ni)),
                pl.BlockSpec((PACK, n_groups, tnp), lambda ni, mi: (0, 0, ni)),
                pl.BlockSpec((PACK, tnp), lambda ni, mi: (0, ni)),
            ],
            out_specs=pl.BlockSpec((PACK, tm, tnp), lambda ni, mi: (0, mi, ni)),
        ),
        compiler_params=pltpu.CompilerParams(
            dimension_semantics=("parallel", "parallel"),
            vmem_limit_bytes=64 * 1024 * 1024,
        ),
    )(x2, qweight, qzeros, s3, b3)

    # Un-interleave nibble planes back to natural column order (single fused
    # XLA transpose + cast; bias already added in-kernel).
    out = out3[:, :m, :].transpose(1, 2, 0).reshape(m, n).astype(x.dtype)
    return out.reshape(*lead, n)


# ---------- synthetic packing + pure-JAX reference (for verification) ----------

def pack_awq(nibbles):
    """nibbles: (rows, N) int32 in [0, 16) -> AWQ packed (rows, N//8) int32."""
    rows, nn = nibbles.shape
    np_ = nn // PACK
    v = nibbles.reshape(rows, np_, PACK).astype(jnp.uint32)
    packed = jnp.zeros((rows, np_), jnp.uint32)
    for r in range(PACK):
        packed = packed | (v[:, :, r] << jnp.uint32(4 * AWQ_INV_ORDER[r]))
    return jax.lax.bitcast_convert_type(packed, jnp.int32)


def dequant_ref(qweight, qzeros, scales, group_size):
    k, np_ = qweight.shape
    n = np_ * PACK
    shifts = jnp.array([4 * AWQ_INV_ORDER[r] for r in range(PACK)], jnp.int32)
    w4 = ((qweight[:, :, None] >> shifts[None, None, :]) & 0xF).reshape(k, n)
    z4 = ((qzeros[:, :, None] >> shifts[None, None, :]) & 0xF).reshape(-1, n)
    z = jnp.repeat(z4, group_size, axis=0)
    # Mirror the kernel numerics: scales held as bf16, dequant math in f32.
    s = jnp.repeat(scales.astype(jnp.bfloat16).astype(jnp.float32),
                   group_size, axis=0)
    return (w4 - z).astype(jnp.float32) * s


if __name__ == "__main__":
    # Small shapes consistent with the module constraints:
    #   in_features % group_size == 0, out_features % 8 == 0
    in_features, out_features, group_size = 256, 256, 64
    batch, seq = 2, 8

    key = jax.random.PRNGKey(0)
    k_x, k_w, k_z, k_s, k_b = jax.random.split(key, 5)

    x = jax.random.normal(k_x, (batch, seq, in_features), dtype=jnp.float32)
    w_nib = jax.random.randint(k_w, (in_features, out_features), 0, 16,
                               dtype=jnp.int32)
    z_nib = jax.random.randint(k_z, (in_features // group_size, out_features),
                               0, 16, dtype=jnp.int32)
    qweight = pack_awq(w_nib)                                   # (K, N//8)   int32
    qzeros = pack_awq(z_nib)                                    # (K//G, N//8) int32
    scales = jax.random.uniform(k_s, (in_features // group_size, out_features),
                                dtype=jnp.float32, minval=0.01, maxval=0.05)
    bias = jax.random.normal(k_b, (out_features,), dtype=jnp.float32) * 0.1

    out = wqlinear_gemm_forward(x, qweight, qzeros, scales, bias, group_size)
    out = jax.block_until_ready(out)

    # Reference mirroring the kernel numerics (bf16 operands, f32 accumulate).
    w_ref = dequant_ref(qweight, qzeros, scales, group_size).astype(jnp.bfloat16)
    x2_ref = x.reshape(-1, in_features).astype(jnp.bfloat16)
    ref = (jnp.dot(x2_ref, w_ref, preferred_element_type=jnp.float32)
           + bias).reshape(batch, seq, out_features)

    assert out.shape == (batch, seq, out_features)
    max_err = float(jnp.max(jnp.abs(out - ref)))
    assert jnp.allclose(out, ref, atol=1e-2, rtol=1e-2), max_err
    print("KERNEL_OK")
</pallas_src>

<mosaic_0001>
module attributes {stable_mosaic.version = 11 : i64} {
  func.func @_awq_gemm_kernel(%arg0: i32, %arg1: i32, %arg2: memref<16x256xbf16, #tpu.memory_space<vmem>>, %arg3: memref<256x32xi32, #tpu.memory_space<vmem>>, %arg4: memref<4x32xi32, #tpu.memory_space<vmem>>, %arg5: memref<8x4x32xbf16, #tpu.memory_space<vmem>>, %arg6: memref<8x32xf32, #tpu.memory_space<vmem>>, %arg7: memref<8x16x32xf32, #tpu.memory_space<vmem>>) attributes {dimension_semantics = [#tpu.dimension_semantics<parallel>, #tpu.dimension_semantics<parallel>], iteration_bounds = array<i64: 1, 1>, scalar_prefetch = 0 : i64, scratch_operands = 0 : i64, tpu.core_type = #tpu.core_type<tc>, window_params = [{transform_indices = @transform_0, window_bounds = array<i64: 16, 256>}, {transform_indices = @transform_1, window_bounds = array<i64: 256, 32>}, {transform_indices = @transform_2, window_bounds = array<i64: 4, 32>}, {transform_indices = @transform_3, window_bounds = array<i64: 8, 4, 32>}, {transform_indices = @transform_4, window_bounds = array<i64: 8, 32>}, {transform_indices = @transform_5, window_bounds = array<i64: 8, 16, 32>}]} {
    %c0 = arith.constant 0 : index
    %c0_0 = arith.constant 0 : index
    %0 = vector.load %arg2[%c0, %c0_0] : memref<16x256xbf16, #tpu.memory_space<vmem>>, vector<16x256xbf16>
    %c0_1 = arith.constant 0 : index
    %c0_2 = arith.constant 0 : index
    %1 = vector.load %arg3[%c0_1, %c0_2] : memref<256x32xi32, #tpu.memory_space<vmem>>, vector<256x32xi32>
    %2 = vector.shape_cast %1 : vector<256x32xi32> to vector<4x64x32xi32>
    %c0_3 = arith.constant 0 : index
    %c0_4 = arith.constant 0 : index
    %3 = vector.load %arg4[%c0_3, %c0_4] : memref<4x32xi32, #tpu.memory_space<vmem>>, vector<4x32xi32>
    %c0_5 = arith.constant 0 : index
    %c0_6 = arith.constant 0 : index
    %c0_7 = arith.constant 0 : index
    %4 = vector.load %arg5[%c0_5, %c0_6, %c0_7] : memref<8x4x32xbf16, #tpu.memory_space<vmem>>, vector<8x4x32xbf16>
    %5 = arith.extf %4 : vector<8x4x32xbf16> to vector<8x4x32xf32>
    %c0_8 = arith.constant 0 : index
    %c0_9 = arith.constant 0 : index
    %6 = vector.load %arg6[%c0_8, %c0_9] : memref<8x32xf32, #tpu.memory_space<vmem>>, vector<8x32xf32>
    %c0_i32 = arith.constant 0 : i32
    %7 = vector.broadcast %c0_i32 : i32 to vector<4x64x32xi32>
    %8 = arith.shrsi %2, %7 : vector<4x64x32xi32>
    %c15_i32 = arith.constant 15 : i32
    %9 = vector.broadcast %c15_i32 : i32 to vector<4x64x32xi32>
    %10 = arith.andi %8, %9 : vector<4x64x32xi32>
    %c0_i32_10 = arith.constant 0 : i32
    %11 = vector.broadcast %c0_i32_10 : i32 to vector<4x32xi32>
    %12 = arith.shrsi %3, %11 : vector<4x32xi32>
    %c15_i32_11 = arith.constant 15 : i32
    %13 = vector.broadcast %c15_i32_11 : i32 to vector<4x32xi32>
    %14 = arith.andi %12, %13 : vector<4x32xi32>
    %15 = vector.shape_cast %14 : vector<4x32xi32> to vector<4x1x32xi32>
    %16 = vector.broadcast %15 : vector<4x1x32xi32> to vector<4x64x32xi32>
    %17 = arith.subi %10, %16 : vector<4x64x32xi32>
    %18 = arith.sitofp %17 : vector<4x64x32xi32> to vector<4x64x32xf32>
    %19 = vector.extract_strided_slice %5 {offsets = [0, 0, 0], sizes = [1, 4, 32], strides = [1, 1, 1]} : vector<8x4x32xf32> to vector<1x4x32xf32>
    %20 = vector.shape_cast %19 : vector<1x4x32xf32> to vector<4x32xf32>
    %21 = vector.shape_cast %20 : vector<4x32xf32> to vector<4x1x32xf32>
    %22 = vector.broadcast %21 : vector<4x1x32xf32> to vector<4x64x32xf32>
    %23 = arith.mulf %18, %22 : vector<4x64x32xf32>
    %24 = arith.truncf %23 : vector<4x64x32xf32> to vector<4x64x32xbf16>
    %25 = vector.shape_cast %24 : vector<4x64x32xbf16> to vector<256x32xbf16>
    %cst = arith.constant dense<0.000000e+00> : vector<16x32xf32>
    %26 = tpu.matmul %0, %25, %cst {dimension_numbers = #tpu.dot_dimension_numbers<[1], [0], [0], [1], [0, 0, 1, 1], [], []>} : vector<16x256xbf16>, vector<256x32xbf16>, vector<16x32xf32> -> vector<16x32xf32>
    %27 = vector.extract_strided_slice %6 {offsets = [0, 0], sizes = [1, 32], strides = [1, 1]} : vector<8x32xf32> to vector<1x32xf32>
    %28 = vector.broadcast %27 : vector<1x32xf32> to vector<16x32xf32>
    %29 = arith.addf %26, %28 : vector<16x32xf32>
    %c0_12 = arith.constant 0 : index
    %c0_13 = arith.constant 0 : index
    %c0_14 = arith.constant 0 : index
    %30 = vector.load %arg7[%c0_12, %c0_13, %c0_14] : memref<8x16x32xf32, #tpu.memory_space<vmem>>, vector<1x16x32xf32>
    %31 = vector.shape_cast %30 : vector<1x16x32xf32> to vector<16x32xf32>
    %32 = vector.shape_cast %29 : vector<16x32xf32> to vector<1x16x32xf32>
    tpu.vector_store %arg7[%c0_12, %c0_13, %c0_14], %32 {strides = array<i32>} : memref<8x16x32xf32, #tpu.memory_space<vmem>>, vector<1x16x32xf32>,
    %c16_i32 = arith.constant 16 : i32
    %33 = vector.broadcast %c16_i32 : i32 to vector<4x64x32xi32>
    %34 = arith.shrsi %2, %33 : vector<4x64x32xi32>
    %c15_i32_15 = arith.constant 15 : i32
    %35 = vector.broadcast %c15_i32_15 : i32 to vector<4x64x32xi32>
    %36 = arith.andi %34, %35 : vector<4x64x32xi32>
    %c16_i32_16 = arith.constant 16 : i32
    %37 = vector.broadcast %c16_i32_16 : i32 to vector<4x32xi32>
    %38 = arith.shrsi %3, %37 : vector<4x32xi32>
    %c15_i32_17 = arith.constant 15 : i32
    %39 = vector.broadcast %c15_i32_17 : i32 to vector<4x32xi32>
    %40 = arith.andi %38, %39 : vector<4x32xi32>
    %41 = vector.shape_cast %40 : vector<4x32xi32> to vector<4x1x32xi32>
    %42 = vector.broadcast %41 : vector<4x1x32xi32> to vector<4x64x32xi32>
    %43 = arith.subi %36, %42 : vector<4x64x32xi32>
    %44 = arith.sitofp %43 : vector<4x64x32xi32> to vector<4x64x32xf32>
    %45 = vector.extract_strided_slice %5 {offsets = [1, 0, 0], sizes = [1, 4, 32], strides = [1, 1, 1]} : vector<8x4x32xf32> to vector<1x4x32xf32>
    %46 = vector.shape_cast %45 : vector<1x4x32xf32> to vector<4x32xf32>
    %47 = vector.shape_cast %46 : vector<4x32xf32> to vector<4x1x32xf32>
    %48 = vector.broadcast %47 : vector<4x1x32xf32> to vector<4x64x32xf32>
    %49 = arith.mulf %44, %48 : vector<4x64x32xf32>
    %50 = arith.truncf %49 : vector<4x64x32xf32> to vector<4x64x32xbf16>
    %51 = vector.shape_cast %50 : vector<4x64x32xbf16> to vector<256x32xbf16>
    %cst_18 = arith.constant dense<0.000000e+00> : vector<16x32xf32>
    %52 = tpu.matmul %0, %51, %cst_18 {dimension_numbers = #tpu.dot_dimension_numbers<[1], [0], [0], [1], [0, 0, 1, 1], [], []>} : vector<16x256xbf16>, vector<256x32xbf16>, vector<16x32xf32> -> vector<16x32xf32>
    %53 = vector.extract_strided_slice %6 {offsets = [1, 0], sizes = [1, 32], strides = [1, 1]} : vector<8x32xf32> to vector<1x32xf32>
    %54 = vector.broadcast %53 : vector<1x32xf32> to vector<16x32xf32>
    %55 = arith.addf %52, %54 : vector<16x32xf32>
    %c1 = arith.constant 1 : index
    %c0_19 = arith.constant 0 : index
    %c0_20 = arith.constant 0 : index
    %56 = vector.load %arg7[%c1, %c0_19, %c0_20] : memref<8x16x32xf32, #tpu.memory_space<vmem>>, vector<1x16x32xf32>
    %57 = vector.shape_cast %56 : vector<1x16x32xf32> to vector<16x32xf32>
    %58 = vector.shape_cast %55 : vector<16x32xf32> to vector<1x16x32xf32>
    tpu.vector_store %arg7[%c1, %c0_19, %c0_20], %58 {strides = array<i32>} : memref<8x16x32xf32, #tpu.memory_space<vmem>>, vector<1x16x32xf32>,
    %c4_i32 = arith.constant 4 : i32
    %59 = vector.broadcast %c4_i32 : i32 to vector<4x64x32xi32>
    %60 = arith.shrsi %2, %59 : vector<4x64x32xi32>
    %c15_i32_21 = arith.constant 15 : i32
    %61 = vector.broadcast %c15_i32_21 : i32 to vector<4x64x32xi32>
    %62 = arith.andi %60, %61 : vector<4x64x32xi32>
    %c4_i32_22 = arith.constant 4 : i32
    %63 = vector.broadcast %c4_i32_22 : i32 to vector<4x32xi32>
    %64 = arith.shrsi %3, %63 : vector<4x32xi32>
    %c15_i32_23 = arith.constant 15 : i32
    %65 = vector.broadcast %c15_i32_23 : i32 to vector<4x32xi32>
    %66 = arith.andi %64, %65 : vector<4x32xi32>
    %67 = vector.shape_cast %66 : vector<4x32xi32> to vector<4x1x32xi32>
    %68 = vector.broadcast %67 : vector<4x1x32xi32> to vector<4x64x32xi32>
    %69 = arith.subi %62, %68 : vector<4x64x32xi32>
    %70 = arith.sitofp %69 : vector<4x64x32xi32> to vector<4x64x32xf32>
    %71 = vector.extract_strided_slice %5 {offsets = [2, 0, 0], sizes = [1, 4, 32], strides = [1, 1, 1]} : vector<8x4x32xf32> to vector<1x4x32xf32>
    %72 = vector.shape_cast %71 : vector<1x4x32xf32> to vector<4x32xf32>
    %73 = vector.shape_cast %72 : vector<4x32xf32> to vector<4x1x32xf32>
    %74 = vector.broadcast %73 : vector<4x1x32xf32> to vector<4x64x32xf32>
    %75 = arith.mulf %70, %74 : vector<4x64x32xf32>
    %76 = arith.truncf %75 : vector<4x64x32xf32> to vector<4x64x32xbf16>
    %77 = vector.shape_cast %76 : vector<4x64x32xbf16> to vector<256x32xbf16>
    %cst_24 = arith.constant dense<0.000000e+00> : vector<16x32xf32>
    %78 = tpu.matmul %0, %77, %cst_24 {dimension_numbers = #tpu.dot_dimension_numbers<[1], [0], [0], [1], [0, 0, 1, 1], [], []>} : vector<16x256xbf16>, vector<256x32xbf16>, vector<16x32xf32> -> vector<16x32xf32>
    %79 = vector.extract_strided_slice %6 {offsets = [2, 0], sizes = [1, 32], strides = [1, 1]} : vector<8x32xf32> to vector<1x32xf32>
    %80 = vector.broadcast %79 : vector<1x32xf32> to vector<16x32xf32>
    %81 = arith.addf %78, %80 : vector<16x32xf32>
    %c2 = arith.constant 2 : index
    %c0_25 = arith.constant 0 : index
    %c0_26 = arith.constant 0 : index
    %82 = vector.load %arg7[%c2, %c0_25, %c0_26] : memref<8x16x32xf32, #tpu.memory_space<vmem>>, vector<1x16x32xf32>
    %83 = vector.shape_cast %82 : vector<1x16x32xf32> to vector<16x32xf32>
    %84 = vector.shape_cast %81 : vector<16x32xf32> to vector<1x16x32xf32>
    tpu.vector_store %arg7[%c2, %c0_25, %c0_26], %84 {strides = array<i32>} : memref<8x16x32xf32, #tpu.memory_space<vmem>>, vector<1x16x32xf32>,
    %c20_i32 = arith.constant 20 : i32
    %85 = vector.broadcast %c20_i32 : i32 to vector<4x64x32xi32>
    %86 = arith.shrsi %2, %85 : vector<4x64x32xi32>
    %c15_i32_27 = arith.constant 15 : i32
    %87 = vector.broadcast %c15_i32_27 : i32 to vector<4x64x32xi32>
    %88 = arith.andi %86, %87 : vector<4x64x32xi32>
    %c20_i32_28 = arith.constant 20 : i32
    %89 = vector.broadcast %c20_i32_28 : i32 to vector<4x32xi32>
    %90 = arith.shrsi %3, %89 : vector<4x32xi32>
    %c15_i32_29 = arith.constant 15 : i32
    %91 = vector.broadcast %c15_i32_29 : i32 to vector<4x32xi32>
    %92 = arith.andi %90, %91 : vector<4x32xi32>
    %93 = vector.shape_cast %92 : vector<4x32xi32> to vector<4x1x32xi32>
    %94 = vector.broadcast %93 : vector<4x1x32xi32> to vector<4x64x32xi32>
    %95 = arith.subi %88, %94 : vector<4x64x32xi32>
    %96 = arith.sitofp %95 : vector<4x64x32xi32> to vector<4x64x32xf32>
    %97 = vector.extract_strided_slice %5 {offsets = [3, 0, 0], sizes = [1, 4, 32], strides = [1, 1, 1]} : vector<8x4x32xf32> to vector<1x4x32xf32>
    %98 = vector.shape_cast %97 : vector<1x4x32xf32> to vector<4x32xf32>
    %99 = vector.shape_cast %98 : vector<4x32xf32> to vector<4x1x32xf32>
    %100 = vector.broadcast %99 : vector<4x1x32xf32> to vector<4x64x32xf32>
    %101 = arith.mulf %96, %100 : vector<4x64x32xf32>
    %102 = arith.truncf %101 : vector<4x64x32xf32> to vector<4x64x32xbf16>
    %103 = vector.shape_cast %102 : vector<4x64x32xbf16> to vector<256x32xbf16>
    %cst_30 = arith.constant dense<0.000000e+00> : vector<16x32xf32>
    %104 = tpu.matmul %0, %103, %cst_30 {dimension_numbers = #tpu.dot_dimension_numbers<[1], [0], [0], [1], [0, 0, 1, 1], [], []>} : vector<16x256xbf16>, vector<256x32xbf16>, vector<16x32xf32> -> vector<16x32xf32>
    %105 = vector.extract_strided_slice %6 {offsets = [3, 0], sizes = [1, 32], strides = [1, 1]} : vector<8x32xf32> to vector<1x32xf32>
    %106 = vector.broadcast %105 : vector<1x32xf32> to vector<16x32xf32>
    %107 = arith.addf %104, %106 : vector<16x32xf32>
    %c3 = arith.constant 3 : index
    %c0_31 = arith.constant 0 : index
    %c0_32 = arith.constant 0 : index
    %108 = vector.load %arg7[%c3, %c0_31, %c0_32] : memref<8x16x32xf32, #tpu.memory_space<vmem>>, vector<1x16x32xf32>
    %109 = vector.shape_cast %108 : vector<1x16x32xf32> to vector<16x32xf32>
    %110 = vector.shape_cast %107 : vector<16x32xf32> to vector<1x16x32xf32>
    tpu.vector_store %arg7[%c3, %c0_31, %c0_32], %110 {strides = array<i32>} : memref<8x16x32xf32, #tpu.memory_space<vmem>>, vector<1x16x32xf32>,
    %c8_i32 = arith.constant 8 : i32
    %111 = vector.broadcast %c8_i32 : i32 to vector<4x64x32xi32>
    %112 = arith.shrsi %2, %111 : vector<4x64x32xi32>
    %c15_i32_33 = arith.constant 15 : i32
    %113 = vector.broadcast %c15_i32_33 : i32 to vector<4x64x32xi32>
    %114 = arith.andi %112, %113 : vector<4x64x32xi32>
    %c8_i32_34 = arith.constant 8 : i32
    %115 = vector.broadcast %c8_i32_34 : i32 to vector<4x32xi32>
    %116 = arith.shrsi %3, %115 : vector<4x32xi32>
    %c15_i32_35 = arith.constant 15 : i32
    %117 = vector.broadcast %c15_i32_35 : i32 to vector<4x32xi32>
    %118 = arith.andi %116, %117 : vector<4x32xi32>
    %119 = vector.shape_cast %118 : vector<4x32xi32> to vector<4x1x32xi32>
    %120 = vector.broadcast %119 : vector<4x1x32xi32> to vector<4x64x32xi32>
    %121 = arith.subi %114, %120 : vector<4x64x32xi32>
    %122 = arith.sitofp %121 : vector<4x64x32xi32> to vector<4x64x32xf32>
    %123 = vector.extract_strided_slice %5 {offsets = [4, 0, 0], sizes = [1, 4, 32], strides = [1, 1, 1]} : vector<8x4x32xf32> to vector<1x4x32xf32>
    %124 = vector.shape_cast %123 : vector<1x4x32xf32> to vector<4x32xf32>
    %125 = vector.shape_cast %124 : vector<4x32xf32> to vector<4x1x32xf32>
    %126 = vector.broadcast %125 : vector<4x1x32xf32> to vector<4x64x32xf32>
    %127 = arith.mulf %122, %126 : vector<4x64x32xf32>
    %128 = arith.truncf %127 : vector<4x64x32xf32> to vector<4x64x32xbf16>
    %129 = vector.shape_cast %128 : vector<4x64x32xbf16> to vector<256x32xbf16>
    %cst_36 = arith.constant dense<0.000000e+00> : vector<16x32xf32>
    %130 = tpu.matmul %0, %129, %cst_36 {dimension_numbers = #tpu.dot_dimension_numbers<[1], [0], [0], [1], [0, 0, 1, 1], [], []>} : vector<16x256xbf16>, vector<256x32xbf16>, vector<16x32xf32> -> vector<16x32xf32>
    %131 = vector.extract_strided_slice %6 {offsets = [4, 0], sizes = [1, 32], strides = [1, 1]} : vector<8x32xf32> to vector<1x32xf32>
    %132 = vector.broadcast %131 : vector<1x32xf32> to vector<16x32xf32>
    %133 = arith.addf %130, %132 : vector<16x32xf32>
    %c4 = arith.constant 4 : index
    %c0_37 = arith.constant 0 : index
    %c0_38 = arith.constant 0 : index
    %134 = vector.load %arg7[%c4, %c0_37, %c0_38] : memref<8x16x32xf32, #tpu.memory_space<vmem>>, vector<1x16x32xf32>
    %135 = vector.shape_cast %134 : vector<1x16x32xf32> to vector<16x32xf32>
    %136 = vector.shape_cast %133 : vector<16x32xf32> to vector<1x16x32xf32>
    tpu.vector_store %arg7[%c4, %c0_37, %c0_38], %136 {strides = array<i32>} : memref<8x16x32xf32, #tpu.memory_space<vmem>>, vector<1x16x32xf32>,
    %c24_i32 = arith.constant 24 : i32
    %137 = vector.broadcast %c24_i32 : i32 to vector<4x64x32xi32>
    %138 = arith.shrsi %2, %137 : vector<4x64x32xi32>
    %c15_i32_39 = arith.constant 15 : i32
    %139 = vector.broadcast %c15_i32_39 : i32 to vector<4x64x32xi32>
    %140 = arith.andi %138, %139 : vector<4x64x32xi32>
    %c24_i32_40 = arith.constant 24 : i32
    %141 = vector.broadcast %c24_i32_40 : i32 to vector<4x32xi32>
    %142 = arith.shrsi %3, %141 : vector<4x32xi32>
    %c15_i32_41 = arith.constant 15 : i32
    %143 = vector.broadcast %c15_i32_41 : i32 to vector<4x32xi32>
    %144 = arith.andi %142, %143 : vector<4x32xi32>
    %145 = vector.shape_cast %144 : vector<4x32xi32> to vector<4x1x32xi32>
    %146 = vector.broadcast %145 : vector<4x1x32xi32> to vector<4x64x32xi32>
    %147 = arith.subi %140, %146 : vector<4x64x32xi32>
    %148 = arith.sitofp %147 : vector<4x64x32xi32> to vector<4x64x32xf32>
    %149 = vector.extract_strided_slice %5 {offsets = [5, 0, 0], sizes = [1, 4, 32], strides = [1, 1, 1]} : vector<8x4x32xf32> to vector<1x4x32xf32>
    %150 = vector.shape_cast %149 : vector<1x4x32xf32> to vector<4x32xf32>
    %151 = vector.shape_cast %150 : vector<4x32xf32> to vector<4x1x32xf32>
    %152 = vector.broadcast %151 : vector<4x1x32xf32> to vector<4x64x32xf32>
    %153 = arith.mulf %148, %152 : vector<4x64x32xf32>
    %154 = arith.truncf %153 : vector<4x64x32xf32> to vector<4x64x32xbf16>
    %155 = vector.shape_cast %154 : vector<4x64x32xbf16> to vector<256x32xbf16>
    %cst_42 = arith.constant dense<0.000000e+00> : vector<16x32xf32>
    %156 = tpu.matmul %0, %155, %cst_42 {dimension_numbers = #tpu.dot_dimension_numbers<[1], [0], [0], [1], [0, 0, 1, 1], [], []>} : vector<16x256xbf16>, vector<256x32xbf16>, vector<16x32xf32> -> vector<16x32xf32>
    %157 = vector.extract_strided_slice %6 {offsets = [5, 0], sizes = [1, 32], strides = [1, 1]} : vector<8x32xf32> to vector<1x32xf32>
    %158 = vector.broadcast %157 : vector<1x32xf32> to vector<16x32xf32>
    %159 = arith.addf %156, %158 : vector<16x32xf32>
    %c5 = arith.constant 5 : index
    %c0_43 = arith.constant 0 : index
    %c0_44 = arith.constant 0 : index
    %160 = vector.load %arg7[%c5, %c0_43, %c0_44] : memref<8x16x32xf32, #tpu.memory_space<vmem>>, vector<1x16x32xf32>
    %161 = vector.shape_cast %160 : vector<1x16x32xf32> to vector<16x32xf32>
    %162 = vector.shape_cast %159 : vector<16x32xf32> to vector<1x16x32xf32>
    tpu.vector_store %arg7[%c5, %c0_43, %c0_44], %162 {strides = array<i32>} : memref<8x16x32xf32, #tpu.memory_space<vmem>>, vector<1x16x32xf32>,
    %c12_i32 = arith.constant 12 : i32
    %163 = vector.broadcast %c12_i32 : i32 to vector<4x64x32xi32>
    %164 = arith.shrsi %2, %163 : vector<4x64x32xi32>
    %c15_i32_45 = arith.constant 15 : i32
    %165 = vector.broadcast %c15_i32_45 : i32 to vector<4x64x32xi32>
    %166 = arith.andi %164, %165 : vector<4x64x32xi32>
    %c12_i32_46 = arith.constant 12 : i32
    %167 = vector.broadcast %c12_i32_46 : i32 to vector<4x32xi32>
    %168 = arith.shrsi %3, %167 : vector<4x32xi32>
    %c15_i32_47 = arith.constant 15 : i32
    %169 = vector.broadcast %c15_i32_47 : i32 to vector<4x32xi32>
    %170 = arith.andi %168, %169 : vector<4x32xi32>
    %171 = vector.shape_cast %170 : vector<4x32xi32> to vector<4x1x32xi32>
    %172 = vector.broadcast %171 : vector<4x1x32xi32> to vector<4x64x32xi32>
    %173 = arith.subi %166, %172 : vector<4x64x32xi32>
    %174 = arith.sitofp %173 : vector<4x64x32xi32> to vector<4x64x32xf32>
    %175 = vector.extract_strided_slice %5 {offsets = [6, 0, 0], sizes = [1, 4, 32], strides = [1, 1, 1]} : vector<8x4x32xf32> to vector<1x4x32xf32>
    %176 = vector.shape_cast %175 : vector<1x4x32xf32> to vector<4x32xf32>
    %177 = vector.shape_cast %176 : vector<4x32xf32> to vector<4x1x32xf32>
    %178 = vector.broadcast %177 : vector<4x1x32xf32> to vector<4x64x32xf32>
    %179 = arith.mulf %174, %178 : vector<4x64x32xf32>
    %180 = arith.truncf %179 : vector<4x64x32xf32> to vector<4x64x32xbf16>
    %181 = vector.shape_cast %180 : vector<4x64x32xbf16> to vector<256x32xbf16>
    %cst_48 = arith.constant dense<0.000000e+00> : vector<16x32xf32>
    %182 = tpu.matmul %0, %181, %cst_48 {dimension_numbers = #tpu.dot_dimension_numbers<[1], [0], [0], [1], [0, 0, 1, 1], [], []>} : vector<16x256xbf16>, vector<256x32xbf16>, vector<16x32xf32> -> vector<16x32xf32>
    %183 = vector.extract_strided_slice %6 {offsets = [6, 0], sizes = [1, 32], strides = [1, 1]} : vector<8x32xf32> to vector<1x32xf32>
    %184 = vector.broadcast %183 : vector<1x32xf32> to vector<16x32xf32>
    %185 = arith.addf %182, %184 : vector<16x32xf32>
    %c6 = arith.constant 6 : index
    %c0_49 = arith.constant 0 : index
    %c0_50 = arith.constant 0 : index
    %186 = vector.load %arg7[%c6, %c0_49, %c0_50] : memref<8x16x32xf32, #tpu.memory_space<vmem>>, vector<1x16x32xf32>
    %187 = vector.shape_cast %186 : vector<1x16x32xf32> to vector<16x32xf32>
    %188 = vector.shape_cast %185 : vector<16x32xf32> to vector<1x16x32xf32>
    tpu.vector_store %arg7[%c6, %c0_49, %c0_50], %188 {strides = array<i32>} : memref<8x16x32xf32, #tpu.memory_space<vmem>>, vector<1x16x32xf32>,
    %c28_i32 = arith.constant 28 : i32
    %189 = vector.broadcast %c28_i32 : i32 to vector<4x64x32xi32>
    %190 = arith.shrsi %2, %189 : vector<4x64x32xi32>
    %c15_i32_51 = arith.constant 15 : i32
    %191 = vector.broadcast %c15_i32_51 : i32 to vector<4x64x32xi32>
    %192 = arith.andi %190, %191 : vector<4x64x32xi32>
    %c28_i32_52 = arith.constant 28 : i32
    %193 = vector.broadcast %c28_i32_52 : i32 to vector<4x32xi32>
    %194 = arith.shrsi %3, %193 : vector<4x32xi32>
    %c15_i32_53 = arith.constant 15 : i32
    %195 = vector.broadcast %c15_i32_53 : i32 to vector<4x32xi32>
    %196 = arith.andi %194, %195 : vector<4x32xi32>
    %197 = vector.shape_cast %196 : vector<4x32xi32> to vector<4x1x32xi32>
    %198 = vector.broadcast %197 : vector<4x1x32xi32> to vector<4x64x32xi32>
    %199 = arith.subi %192, %198 : vector<4x64x32xi32>
    %200 = arith.sitofp %199 : vector<4x64x32xi32> to vector<4x64x32xf32>
    %201 = vector.extract_strided_slice %5 {offsets = [7, 0, 0], sizes = [1, 4, 32], strides = [1, 1, 1]} : vector<8x4x32xf32> to vector<1x4x32xf32>
    %202 = vector.shape_cast %201 : vector<1x4x32xf32> to vector<4x32xf32>
    %203 = vector.shape_cast %202 : vector<4x32xf32> to vector<4x1x32xf32>
    %204 = vector.broadcast %203 : vector<4x1x32xf32> to vector<4x64x32xf32>
    %205 = arith.mulf %200, %204 : vector<4x64x32xf32>
    %206 = arith.truncf %205 : vector<4x64x32xf32> to vector<4x64x32xbf16>
    %207 = vector.shape_cast %206 : vector<4x64x32xbf16> to vector<256x32xbf16>
    %cst_54 = arith.constant dense<0.000000e+00> : vector<16x32xf32>
    %208 = tpu.matmul %0, %207, %cst_54 {dimension_numbers = #tpu.dot_dimension_numbers<[1], [0], [0], [1], [0, 0, 1, 1], [], []>} : vector<16x256xbf16>, vector<256x32xbf16>, vector<16x32xf32> -> vector<16x32xf32>
    %209 = vector.extract_strided_slice %6 {offsets = [7, 0], sizes = [1, 32], strides = [1, 1]} : vector<8x32xf32> to vector<1x32xf32>
    %210 = vector.broadcast %209 : vector<1x32xf32> to vector<16x32xf32>
    %211 = arith.addf %208, %210 : vector<16x32xf32>
    %c7 = arith.constant 7 : index
    %c0_55 = arith.constant 0 : index
    %c0_56 = arith.constant 0 : index
    %212 = vector.load %arg7[%c7, %c0_55, %c0_56] : memref<8x16x32xf32, #tpu.memory_space<vmem>>, vector<1x16x32xf32>
    %213 = vector.shape_cast %212 : vector<1x16x32xf32> to vector<16x32xf32>
    %214 = vector.shape_cast %211 : vector<16x32xf32> to vector<1x16x32xf32>
    tpu.vector_store %arg7[%c7, %c0_55, %c0_56], %214 {strides = array<i32>} : memref<8x16x32xf32, #tpu.memory_space<vmem>>, vector<1x16x32xf32>,
    return
  }
  func.func @transform_0(%arg0: i32, %arg1: i32) -> (i32, i32) {
    %c0_i32 = arith.constant 0 : i32
    %c0_i32_0 = arith.constant 0 : i32
    return %arg1, %c0_i32 : i32, i32
  }
  func.func @transform_1(%arg0: i32, %arg1: i32) -> (i32, i32) {
    %c0_i32 = arith.constant 0 : i32
    %c0_i32_0 = arith.constant 0 : i32
    return %c0_i32, %arg0 : i32, i32
  }
  func.func @transform_2(%arg0: i32, %arg1: i32) -> (i32, i32) {
    %c0_i32 = arith.constant 0 : i32
    %c0_i32_0 = arith.constant 0 : i32
    return %c0_i32, %arg0 : i32, i32
  }
  func.func @transform_3(%arg0: i32, %arg1: i32) -> (i32, i32, i32) {
    %c0_i32 = arith.constant 0 : i32
    %c0_i32_0 = arith.constant 0 : i32
    %c0_i32_1 = arith.constant 0 : i32
    return %c0_i32, %c0_i32_0, %arg0 : i32, i32, i32
  }
  func.func @transform_4(%arg0: i32, %arg1: i32) -> (i32, i32) {
    %c0_i32 = arith.constant 0 : i32
    %c0_i32_0 = arith.constant 0 : i32
    return %c0_i32, %arg0 : i32, i32
  }
  func.func @transform_5(%arg0: i32, %arg1: i32) -> (i32, i32, i32) {
    %c0_i32 = arith.constant 0 : i32
    %c0_i32_0 = arith.constant 0 : i32
    return %c0_i32, %arg1, %arg0 : i32, i32, i32
  }
}

</mosaic_0001>

<llo_original>
// kernel: tpu_custom_call.1
$region0: #{tpu_custom_call.1}
  #allocation0 [shape = 'u32[]', space=smem, size = 0x4, offset = 0x4, fixed_abs, tag = 'smem constant byte address 0x4 - core index']
  #allocation1 [shape = 'u32[144,128]{1,0:T(1,128)}', space=vmem, size = 0x12000, scoped, tag = 'internal scratch']
  %s0 = inlined_call_operand.hbm [shape: bf16[16,256], index: 0, kind: input, shape index: {}]
  %s1 = inlined_call_operand.hbm [shape: s32[256,32], index: 1, kind: input, shape index: {}]
  %s2 = inlined_call_operand.hbm [shape: s32[4,32], index: 2, kind: input, shape index: {}]
  %s3 = inlined_call_operand.hbm [shape: bf16[8,4,32], index: 3, kind: input, shape index: {}]
  %s4 = inlined_call_operand.hbm [shape: f32[8,32], index: 4, kind: input, shape index: {}]
  %s5 = inlined_call_operand.hbm [shape: f32[8,16,32], index: 5, kind: output, shape index: {}]
  %s6 = sld [smem:[#allocation0]]
  $region50: #{tpu_custom_call.1} parent=0
    _
  %s8 = ssub.s32 1, %s6
  %s9 = scalar_select 0, %s8, %s6
  $region1: #{tpu_custom_call.1} parent=0
    #allocation2 [shape = 'u8[8192]{0}', space=vmem, size = 0x2000, scoped, tag = 'input window, operand 0, single buffered']
    #allocation3 [shape = 's32[1]{0}', space=sflag, size = 0x4, scoped, tag = 'scoped memory for tpu_custom_call.1']
    #allocation4 [shape = 's32[1]{0}', space=sflag, size = 0x4, scoped, tag = 'scoped memory for tpu_custom_call.1']
    #allocation5 [shape = 'u8[131072]{0}', space=vmem, size = 0x20000, scoped, tag = 'input window, operand 1, single buffered']
    #allocation6 [shape = 's32[1]{0}', space=sflag, size = 0x4, scoped, tag = 'scoped memory for tpu_custom_call.1']
    #allocation7 [shape = 'u8[2048]{0}', space=vmem, size = 0x800, scoped, tag = 'input window, operand 2, single buffered']
    #allocation8 [shape = 'u8[8192]{0}', space=vmem, size = 0x2000, scoped, tag = 'input window, operand 3, single buffered']
    #allocation9 [shape = 's32[1]{0}', space=sflag, size = 0x4, scoped, tag = 'scoped memory for tpu_custom_call.1']
    #allocation10 [shape = 'u8[4096]{0}', space=vmem, size = 0x1000, scoped, tag = 'input window, operand 4, single buffered']
    #allocation11 [shape = 'u8[65536]{0}', space=vmem, size = 0x10000, scoped, tag = 'output window, operand 0, single buffered']
    %10 = vsyncpa [#allocation3], 0
    %11 = vsyncpa [#allocation6], 0
    %12 = vsyncpa [#allocation9], 0
    %13 = vsyncpa [#allocation4], 0
    // Predicated region
    $region2: #{tpu_custom_call.1} parent=1 // pred_check
      _
    $region3: #{tpu_custom_call.1} parent=1 // pred_check_branch
      %15 = sbr.rel (0) target = $region5
    $region4: #{tpu_custom_call.1} parent=1 // pred_region
      %s17 = ssub.s32 256, 256
      %18 = vsyncadd [#allocation3], %s17
      %s19 = sshll.u32 [#allocation2], 4
      %s20 = int_to_ptr.vmem [resolvable:$true] %s19
      %25 = dma.hbm_to_vmem [thread:$0]  %s0, 256, %s20, [#allocation3], 128, 128, 8
    $region5: #{tpu_custom_call.1} parent=1 // pred_fallthru
      _
    // Predicated region
    $region6: #{tpu_custom_call.1} parent=1 // pred_check
      _
    $region7: #{tpu_custom_call.1} parent=1 // pred_check_branch
      %27 = sbr.rel (0) target = $region9
    $region8: #{tpu_custom_call.1} parent=1 // pred_region
      %s29 = ssub.s32 4096, 4096
      %30 = vsyncadd [#allocation6], %s29
      %s31 = sshll.u32 [#allocation5], 4
      %s32 = int_to_ptr.vmem [resolvable:$true] %s31
      %37 = dma.hbm_to_vmem [thread:$0]  %s1, 4096, %s32, [#allocation6], 128, 128, 8
    $region9: #{tpu_custom_call.1} parent=1 // pred_fallthru
      _
    // Predicated region
    $region10: #{tpu_custom_call.1} parent=1 // pred_check
      _
    $region11: #{tpu_custom_call.1} parent=1 // pred_check_branch
      %39 = sbr.rel (0) target = $region13
    $region12: #{tpu_custom_call.1} parent=1 // pred_region
      %s41 = ssub.s32 64, 64
      %42 = vsyncadd [#allocation6], %s41
      %s44 = sshll.u32 [#allocation7], 4
      %s45 = int_to_ptr.vmem [resolvable:$true] %s44
      %47 = dma.hbm_to_vmem [thread:$0]  %s2, 64, %s45, [#allocation6]
    $region13: #{tpu_custom_call.1} parent=1 // pred_fallthru
      _
    // Predicated region
    $region14: #{tpu_custom_call.1} parent=1 // pred_check
      _
    $region15: #{tpu_custom_call.1} parent=1 // pred_check_branch
      %49 = sbr.rel (0) target = $region17
    $region16: #{tpu_custom_call.1} parent=1 // pred_region
      %s51 = ssub.s32 256, 256
      %52 = vsyncadd [#allocation9], %s51
      %s53 = sshll.u32 [#allocation8], 4
      %s54 = int_to_ptr.vmem [resolvable:$true] %s53
      %59 = dma.hbm_to_vmem [thread:$0]  %s3, 256, %s54, [#allocation9], 32, 32, 2
    $region17: #{tpu_custom_call.1} parent=1 // pred_fallthru
      _
    // Predicated region
    $region18: #{tpu_custom_call.1} parent=1 // pred_check
      _
    $region19: #{tpu_custom_call.1} parent=1 // pred_check_branch
      %61 = sbr.rel (0) target = $region21
    $region20: #{tpu_custom_call.1} parent=1 // pred_region
      %s63 = ssub.s32 128, 128
      %64 = vsyncadd [#allocation9], %s63
      %s66 = sshll.u32 [#allocation10], 4
      %s67 = int_to_ptr.vmem [resolvable:$true] %s66
      %69 = dma.hbm_to_vmem [thread:$0]  %s4, 128, %s67, [#allocation9]
    $region21: #{tpu_custom_call.1} parent=1 // pred_fallthru
      _
    // Predicated region
    $region22: #{tpu_custom_call.1} parent=1 // pred_check
      _
    $region23: #{tpu_custom_call.1} parent=1 // pred_check_branch
      %71 = sbr.rel (0) target = $region25
    $region24: #{tpu_custom_call.1} parent=1 // pred_region
      %72 = dma.done [#allocation3], 256
    $region25: #{tpu_custom_call.1} parent=1 // pred_fallthru
      _
    // Predicated region
    $region26: #{tpu_custom_call.1} parent=1 // pred_check
      _
    $region27: #{tpu_custom_call.1} parent=1 // pred_check_branch
      %74 = sbr.rel (0) target = $region29
    $region28: #{tpu_custom_call.1} parent=1 // pred_region
      %75 = dma.done [#allocation6], 4096
    $region29: #{tpu_custom_call.1} parent=1 // pred_fallthru
      _
    // Predicated region
    $region30: #{tpu_custom_call.1} parent=1 // pred_check
      _
    $region31: #{tpu_custom_call.1} parent=1 // pred_check_branch
      %77 = sbr.rel (0) target = $region33
    $region32: #{tpu_custom_call.1} parent=1 // pred_region
      %78 = dma.done [#allocation6], 64
    $region33: #{tpu_custom_call.1} parent=1 // pred_fallthru
      _
    // Predicated region
    $region34: #{tpu_custom_call.1} parent=1 // pred_check
      _
    $region35: #{tpu_custom_call.1} parent=1 // pred_check_branch
      %80 = sbr.rel (0) target = $region37
    $region36: #{tpu_custom_call.1} parent=1 // pred_region
      %81 = dma.done [#allocation9], 256
    $region37: #{tpu_custom_call.1} parent=1 // pred_fallthru
      _
    // Predicated region
    $region38: #{tpu_custom_call.1} parent=1 // pred_check
      _
    $region39: #{tpu_custom_call.1} parent=1 // pred_check_branch
      %83 = sbr.rel (0) target = $region41
    $region40: #{tpu_custom_call.1} parent=1 // pred_region
      %84 = dma.done [#allocation9], 128
    $region41: #{tpu_custom_call.1} parent=1 // pred_fallthru
      _
    %v86 = vld [vmem:[#allocation2] sm:$0xff]
    %v87 = vld [vmem:[#allocation2 + $0x8] sm:$0xff]
    %v88 = vld [vmem:[#allocation5] sm:$0xff]
    %v89 = vld [vmem:[#allocation5 + $0x8] sm:$0xff]
    %v90 = vld [vmem:[#allocation5 + $0x10] sm:$0xff]
    %v91 = vld [vmem:[#allocation5 + $0x18] sm:$0xff]
    %v92 = vld [vmem:[#allocation5 + $0x20] sm:$0xff]
    %v93 = vld [vmem:[#allocation5 + $0x28] sm:$0xff]
    %v94 = vld [vmem:[#allocation5 + $0x30] sm:$0xff]
    %v95 = vld [vmem:[#allocation5 + $0x38] sm:$0xff]
    %v96 = vld [vmem:[#allocation5 + $0x40] sm:$0xff]
    %v97 = vld [vmem:[#allocation5 + $0x48] sm:$0xff]
    %v98 = vld [vmem:[#allocation5 + $0x50] sm:$0xff]
    %v99 = vld [vmem:[#allocation5 + $0x58] sm:$0xff]
    %v100 = vld [vmem:[#allocation5 + $0x60] sm:$0xff]
    %v101 = vld [vmem:[#allocation5 + $0x68] sm:$0xff]
    %v102 = vld [vmem:[#allocation5 + $0x70] sm:$0xff]
    %v103 = vld [vmem:[#allocation5 + $0x78] sm:$0xff]
    %v104 = vld [vmem:[#allocation5 + $0x80] sm:$0xff]
    %v105 = vld [vmem:[#allocation5 + $0x88] sm:$0xff]
    %v106 = vld [vmem:[#allocation5 + $0x90] sm:$0xff]
    %v107 = vld [vmem:[#allocation5 + $0x98] sm:$0xff]
    %v108 = vld [vmem:[#allocation5 + $0xa0] sm:$0xff]
    %v109 = vld [vmem:[#allocation5 + $0xa8] sm:$0xff]
    %v110 = vld [vmem:[#allocation5 + $0xb0] sm:$0xff]
    %v111 = vld [vmem:[#allocation5 + $0xb8] sm:$0xff]
    %v112 = vld [vmem:[#allocation5 + $0xc0] sm:$0xff]
    %v113 = vld [vmem:[#allocation5 + $0xc8] sm:$0xff]
    %v114 = vld [vmem:[#allocation5 + $0xd0] sm:$0xff]
    %v115 = vld [vmem:[#allocation5 + $0xd8] sm:$0xff]
    %v116 = vld [vmem:[#allocation5 + $0xe0] sm:$0xff]
    %v117 = vld [vmem:[#allocation5 + $0xe8] sm:$0xff]
    %v118 = vld [vmem:[#allocation5 + $0xf0] sm:$0xff]
    %v119 = vld [vmem:[#allocation5 + $0xf8] sm:$0xff]
    %v120 = vld [vmem:[#allocation7] sm:$0xf]
    %v121 = vld [vmem:[#allocation8] sm:$0x3]
    %v122 = vld [vmem:[#allocation8 + $0x2] sm:$0x3]
    %v123 = vld [vmem:[#allocation8 + $0x4] sm:$0x3]
    %v124 = vld [vmem:[#allocation8 + $0x6] sm:$0x3]
    %v125 = vld [vmem:[#allocation8 + $0x8] sm:$0x3]
    %v126 = vld [vmem:[#allocation8 + $0xa] sm:$0x3]
    %v127 = vld [vmem:[#allocation8 + $0xc] sm:$0x3]
    %v128 = vld [vmem:[#allocation8 + $0xe] sm:$0x3]
    %v129 = vunpack.c.l.bf16 %v121
    %v130 = vunpack.c.l.bf16 %v122
    %v131 = vunpack.c.l.bf16 %v123
    %v132 = vunpack.c.l.bf16 %v124
    %v133 = vunpack.c.l.bf16 %v125
    %v134 = vunpack.c.l.bf16 %v126
    %v135 = vunpack.c.l.bf16 %v127
    %v136 = vunpack.c.l.bf16 %v128
    %v137 = vld [vmem:[#allocation10] sm:$0xff]
    %v138 = vand.u32 %v88, 15
    %v139 = vand.u32 %v89, 15
    %v140 = vand.u32 %v90, 15
    %v141 = vand.u32 %v91, 15
    %v142 = vand.u32 %v92, 15
    %v143 = vand.u32 %v93, 15
    %v144 = vand.u32 %v94, 15
    %v145 = vand.u32 %v95, 15
    %v146 = vand.u32 %v96, 15
    %v147 = vand.u32 %v97, 15
    %v148 = vand.u32 %v98, 15
    %v149 = vand.u32 %v99, 15
    %v150 = vand.u32 %v100, 15
    %v151 = vand.u32 %v101, 15
    %v152 = vand.u32 %v102, 15
    %v153 = vand.u32 %v103, 15
    %v154 = vand.u32 %v104, 15
    %v155 = vand.u32 %v105, 15
    %v156 = vand.u32 %v106, 15
    %v157 = vand.u32 %v107, 15
    %v158 = vand.u32 %v108, 15
    %v159 = vand.u32 %v109, 15
    %v160 = vand.u32 %v110, 15
    %v161 = vand.u32 %v111, 15
    %v162 = vand.u32 %v112, 15
    %v163 = vand.u32 %v113, 15
    %v164 = vand.u32 %v114, 15
    %v165 = vand.u32 %v115, 15
    %v166 = vand.u32 %v116, 15
    %v167 = vand.u32 %v117, 15
    %v168 = vand.u32 %v118, 15
    %v169 = vand.u32 %v119, 15
    %v170 = vand.u32 %v120, 15
    %v172 = vunpack.c.l.s4 1966171168
    %v173 = vunpack.c.0.s8 %v172
    %v174 = vlaneseq
    %v175 = vshrl.u32 %v174, 7
    %v176 = vsub.s32 %v173, %v175
    %v177 = vrot.slane %v170, %v176
    %v178 = vcombine.high %v177, %v177
    %v180 = vunpack.c.l.s4 1966171168
    %v181 = vunpack.c.0.s8 %v180
    %v182 = vlaneseq
    %v183 = vshrl.u32 %v182, 7
    %v184 = vsub.s32 %v181, %v183
    %v185 = vrot.slane %v177, %v184
    %v187 = vunpack.c.l.s4 1966171168
    %v188 = vunpack.c.0.s8 %v187
    %v189 = vlaneseq
    %v190 = vshrl.u32 %v189, 7
    %v191 = vsub.s32 %v188, %v190
    %v192 = vrot.slane %v178, %v191
    %v193 = vcombine.high %v185, %v185
    %v194 = vcombine.high %v192, %v192
    %v195 = vlaneseq
    %v196 = vshrl.u32 %v195, 7
    %v197 = vsub.s32 0, %v196
    %v198 = vrot.slane %v185, %v197
    %v199 = vlaneseq
    %v200 = vshrl.u32 %v199, 7
    %v201 = vsub.s32 0, %v200
    %v202 = vrot.slane %v192, %v201
    %v203 = vlaneseq
    %v204 = vshrl.u32 %v203, 7
    %v205 = vsub.s32 0, %v204
    %v206 = vrot.slane %v193, %v205
    %v207 = vlaneseq
    %v208 = vshrl.u32 %v207, 7
    %v209 = vsub.s32 0, %v208
    %v210 = vrot.slane %v194, %v209
    %v211 = vsub.s32 %v138, %v198
    %v212 = vsub.s32 %v139, %v198
    %v213 = vsub.s32 %v140, %v198
    %v214 = vsub.s32 %v141, %v198
    %v215 = vsub.s32 %v142, %v198
    %v216 = vsub.s32 %v143, %v198
    %v217 = vsub.s32 %v144, %v198
    %v218 = vsub.s32 %v145, %v198
    %v219 = vsub.s32 %v146, %v202
    %v220 = vsub.s32 %v147, %v202
    %v221 = vsub.s32 %v148, %v202
    %v222 = vsub.s32 %v149, %v202
    %v223 = vsub.s32 %v150, %v202
    %v224 = vsub.s32 %v151, %v202
    %v225 = vsub.s32 %v152, %v202
    %v226 = vsub.s32 %v153, %v202
    %v227 = vsub.s32 %v154, %v206
    %v228 = vsub.s32 %v155, %v206
    %v229 = vsub.s32 %v156, %v206
    %v230 = vsub.s32 %v157, %v206
    %v231 = vsub.s32 %v158, %v206
    %v232 = vsub.s32 %v159, %v206
    %v233 = vsub.s32 %v160, %v206
    %v234 = vsub.s32 %v161, %v206
    %v235 = vsub.s32 %v162, %v210
    %v236 = vsub.s32 %v163, %v210
    %v237 = vsub.s32 %v164, %v210
    %v238 = vsub.s32 %v165, %v210
    %v239 = vsub.s32 %v166, %v210
    %v240 = vsub.s32 %v167, %v210
    %v241 = vsub.s32 %v168, %v210
    %v242 = vsub.s32 %v169, %v210
    %v243 = vcvt.s32.f32 %v211
    %v244 = vcvt.s32.f32 %v212
    %v245 = vcvt.s32.f32 %v213
    %v246 = vcvt.s32.f32 %v214
    %v247 = vcvt.s32.f32 %v215
    %v248 = vcvt.s32.f32 %v216
    %v249 = vcvt.s32.f32 %v217
    %v250 = vcvt.s32.f32 %v218
    %v251 = vcvt.s32.f32 %v219
    %v252 = vcvt.s32.f32 %v220
    %v253 = vcvt.s32.f32 %v221
    %v254 = vcvt.s32.f32 %v222
    %v255 = vcvt.s32.f32 %v223
    %v256 = vcvt.s32.f32 %v224
    %v257 = vcvt.s32.f32 %v225
    %v258 = vcvt.s32.f32 %v226
    %v259 = vcvt.s32.f32 %v227
    %v260 = vcvt.s32.f32 %v228
    %v261 = vcvt.s32.f32 %v229
    %v262 = vcvt.s32.f32 %v230
    %v263 = vcvt.s32.f32 %v231
    %v264 = vcvt.s32.f32 %v232
    %v265 = vcvt.s32.f32 %v233
    %v266 = vcvt.s32.f32 %v234
    %v267 = vcvt.s32.f32 %v235
    %v268 = vcvt.s32.f32 %v236
    %v269 = vcvt.s32.f32 %v237
    %v270 = vcvt.s32.f32 %v238
    %v271 = vcvt.s32.f32 %v239
    %v272 = vcvt.s32.f32 %v240
    %v273 = vcvt.s32.f32 %v241
    %v274 = vcvt.s32.f32 %v242
    %v277 = vunpack.c.l.s4 1966171168
    %v278 = vunpack.c.0.s8 %v277
    %v279 = vlaneseq
    %v280 = vshrl.u32 %v279, 7
    %v281 = vsub.s32 %v278, %v280
    %v282 = vrot.slane %v129, %v281
    %v283 = vcombine.high %v282, %v282
    %v285 = vunpack.c.l.s4 1966171168
    %v286 = vunpack.c.0.s8 %v285
    %v287 = vlaneseq
    %v288 = vshrl.u32 %v287, 7
    %v289 = vsub.s32 %v286, %v288
    %v290 = vrot.slane %v282, %v289
    %v292 = vunpack.c.l.s4 1966171168
    %v293 = vunpack.c.0.s8 %v292
    %v294 = vlaneseq
    %v295 = vshrl.u32 %v294, 7
    %v296 = vsub.s32 %v293, %v295
    %v297 = vrot.slane %v283, %v296
    %v298 = vcombine.high %v290, %v290
    %v299 = vcombine.high %v297, %v297
    %v300 = vlaneseq
    %v301 = vshrl.u32 %v300, 7
    %v302 = vsub.s32 0, %v301
    %v303 = vrot.slane %v290, %v302
    %v304 = vlaneseq
    %v305 = vshrl.u32 %v304, 7
    %v306 = vsub.s32 0, %v305
    %v307 = vrot.slane %v297, %v306
    %v308 = vlaneseq
    %v309 = vshrl.u32 %v308, 7
    %v310 = vsub.s32 0, %v309
    %v311 = vrot.slane %v298, %v310
    %v312 = vlaneseq
    %v313 = vshrl.u32 %v312, 7
    %v314 = vsub.s32 0, %v313
    %v315 = vrot.slane %v299, %v314
    %v320 = vmul.f32 %v243, %v303
    %v321 = vmul.f32 %v244, %v303
    %v322 = vmul.f32 %v245, %v303
    %v323 = vmul.f32 %v246, %v303
    %v324 = vmul.f32 %v247, %v303
    %v325 = vmul.f32 %v248, %v303
    %v326 = vmul.f32 %v249, %v303
    %v327 = vmul.f32 %v250, %v303
    %v328 = vmul.f32 %v251, %v307
    %v329 = vmul.f32 %v252, %v307
    %v330 = vmul.f32 %v253, %v307
    %v331 = vmul.f32 %v254, %v307
    %v332 = vmul.f32 %v255, %v307
    %v333 = vmul.f32 %v256, %v307
    %v334 = vmul.f32 %v257, %v307
    %v335 = vmul.f32 %v258, %v307
    %v336 = vmul.f32 %v259, %v311
    %v337 = vmul.f32 %v260, %v311
    %v338 = vmul.f32 %v261, %v311
    %v339 = vmul.f32 %v262, %v311
    %v340 = vmul.f32 %v263, %v311
    %v341 = vmul.f32 %v264, %v311
    %v342 = vmul.f32 %v265, %v311
    %v343 = vmul.f32 %v266, %v311
    %v344 = vmul.f32 %v267, %v315
    %v345 = vmul.f32 %v268, %v315
    %v346 = vmul.f32 %v269, %v315
    %v347 = vmul.f32 %v270, %v315
    %v348 = vmul.f32 %v271, %v315
    %v349 = vmul.f32 %v272, %v315
    %v350 = vmul.f32 %v273, %v315
    %v351 = vmul.f32 %v274, %v315
    %v352 = vpack.c.bf16 %v321, %v320
    %v353 = vpack.c.bf16 %v323, %v322
    %v354 = vpack.c.bf16 %v325, %v324
    %v355 = vpack.c.bf16 %v327, %v326
    %v356 = vpack.c.bf16 %v329, %v328
    %v357 = vpack.c.bf16 %v331, %v330
    %v358 = vpack.c.bf16 %v333, %v332
    %v359 = vpack.c.bf16 %v335, %v334
    %v360 = vpack.c.bf16 %v337, %v336
    %v361 = vpack.c.bf16 %v339, %v338
    %v362 = vpack.c.bf16 %v341, %v340
    %v363 = vpack.c.bf16 %v343, %v342
    %v364 = vpack.c.bf16 %v345, %v344
    %v365 = vpack.c.bf16 %v347, %v346
    %v366 = vpack.c.bf16 %v349, %v348
    %v367 = vpack.c.bf16 %v351, %v350
    %v368 = vlaneseq
    %v369 = vshrl.u32 %v368, 7
    %v370 = vsub.s32 0, %v369
    %v371 = vrot.slane %v137, %v370
    %v374 = vunpack.c.l.b16 %v86
    %v375 = vunpack.c.h.b16 %v86
    %v376 = vunpack.c.l.b16 %v87
    %v377 = vunpack.c.h.b16 %v87
    %v378 = vpack.c.b16 %v376, %v374
    %v379 = vpack.c.b16 %v377, %v375
    %382 = vmatprep.subr.bf16.mxu0 0
    %383 = vmatpush1.bf16.msra.mxu0 %v352
    %384 = vmatprep.subr.bf16.mxu0 0
    %385 = vmatpush1.bf16.msra.mxu0 %v353
    %386 = vmatprep.subr.bf16.mxu0 0
    %387 = vmatpush1.bf16.msra.mxu0 %v354
    %388 = vmatprep.subr.bf16.mxu0 0
    %389 = vmatpush1.bf16.msra.mxu0 %v355
    %390 = vmatprep.subr.bf16.mxu0 0
    %391 = vmatpush1.bf16.msra.mxu0 %v356
    %392 = vmatprep.subr.bf16.mxu0 0
    %393 = vmatpush1.bf16.msra.mxu0 %v357
    %394 = vmatprep.subr.bf16.mxu0 0
    %395 = vmatpush1.bf16.msra.mxu0 %v358
    %396 = vmatprep.subr.bf16.mxu0 0
    %397 = vmatpush1.bf16.msra.mxu0 %v359
    %398 = vmatprep.subr.bf16.mxu0 0
    %399 = vmatpush1.bf16.msra.mxu0 %v360
    %400 = vmatprep.subr.bf16.mxu0 0
    %401 = vmatpush1.bf16.msra.mxu0 %v361
    %402 = vmatprep.subr.bf16.mxu0 0
    %403 = vmatpush1.bf16.msra.mxu0 %v362
    %404 = vmatprep.subr.bf16.mxu0 0
    %405 = vmatpush1.bf16.msra.mxu0 %v363
    %406 = vmatprep.subr.bf16.mxu0 0
    %407 = vmatpush1.bf16.msra.mxu0 %v364
    %408 = vmatprep.subr.bf16.mxu0 0
    %409 = vmatpush1.bf16.msra.mxu0 %v365
    %410 = vmatprep.subr.bf16.mxu0 0
    %411 = vmatpush1.bf16.msra.mxu0 %v366
    %412 = vmatprep.subr.bf16.mxu0 0
    %413 = vmatpush1.bf16.msra.mxu0 %v367
    %414 = vmatprep.mubr.bf16.mxu0 %v379
    %415 = vmatmul.mubr.bf16.gmra.mrb[0].mxu0 %v378
    %v416 = vpop.f32.mrb[0].mxu0
    %v417 = vadd.f32 %v371, %v416
    %v418 = vpop.f32.mrb[0].mxu0
    %v419 = vpop.f32.mrb[0].mxu0
    %v420 = vadd.f32 %v371, %v419
    %v421 = vpop.f32.mrb[0].mxu0
    %422 = vdwg.mxu0
    %vm423 = vcmask 261120
    %424 = vst.msk [vmem:[#allocation11] sm:$0xff] %vm423, %v417
    %425 = vst.msk [vmem:[#allocation11 + $0x8] sm:$0xff] %vm423, %v420
    %v426 = vshra.s32 %v88, 16
    %v427 = vshra.s32 %v89, 16
    %v428 = vshra.s32 %v90, 16
    %v429 = vshra.s32 %v91, 16
    %v430 = vshra.s32 %v92, 16
    %v431 = vshra.s32 %v93, 16
    %v432 = vshra.s32 %v94, 16
    %v433 = vshra.s32 %v95, 16
    %v434 = vshra.s32 %v96, 16
    %v435 = vshra.s32 %v97, 16
    %v436 = vshra.s32 %v98, 16
    %v437 = vshra.s32 %v99, 16
    %v438 = vshra.s32 %v100, 16
    %v439 = vshra.s32 %v101, 16
    %v440 = vshra.s32 %v102, 16
    %v441 = vshra.s32 %v103, 16
    %v442 = vshra.s32 %v104, 16
    %v443 = vshra.s32 %v105, 16
    %v444 = vshra.s32 %v106, 16
    %v445 = vshra.s32 %v107, 16
    %v446 = vshra.s32 %v108, 16
    %v447 = vshra.s32 %v109, 16
    %v448 = vshra.s32 %v110, 16
    %v449 = vshra.s32 %v111, 16
    %v450 = vshra.s32 %v112, 16
    %v451 = vshra.s32 %v113, 16
    %v452 = vshra.s32 %v114, 16
    %v453 = vshra.s32 %v115, 16
    %v454 = vshra.s32 %v116, 16
    %v455 = vshra.s32 %v117, 16
    %v456 = vshra.s32 %v118, 16
    %v457 = vshra.s32 %v119, 16
    %v458 = vand.u32 %v426, 15
    %v459 = vand.u32 %v427, 15
    %v460 = vand.u32 %v428, 15
    %v461 = vand.u32 %v429, 15
    %v462 = vand.u32 %v430, 15
    %v463 = vand.u32 %v431, 15
    %v464 = vand.u32 %v432, 15
    %v465 = vand.u32 %v433, 15
    %v466 = vand.u32 %v434, 15
    %v467 = vand.u32 %v435, 15
    %v468 = vand.u32 %v436, 15
    %v469 = vand.u32 %v437, 15
    %v470 = vand.u32 %v438, 15
    %v471 = vand.u32 %v439, 15
    %v472 = vand.u32 %v440, 15
    %v473 = vand.u32 %v441, 15
    %v474 = vand.u32 %v442, 15
    %v475 = vand.u32 %v443, 15
    %v476 = vand.u32 %v444, 15
    %v477 = vand.u32 %v445, 15
    %v478 = vand.u32 %v446, 15
    %v479 = vand.u32 %v447, 15
    %v480 = vand.u32 %v448, 15
    %v481 = vand.u32 %v449, 15
    %v482 = vand.u32 %v450, 15
    %v483 = vand.u32 %v451, 15
    %v484 = vand.u32 %v452, 15
    %v485 = vand.u32 %v453, 15
    %v486 = vand.u32 %v454, 15
    %v487 = vand.u32 %v455, 15
    %v488 = vand.u32 %v456, 15
    %v489 = vand.u32 %v457, 15
    %v490 = vshra.s32 %v120, 16
    %v491 = vand.u32 %v490, 15
    %v493 = vunpack.c.l.s4 1966171168
    %v494 = vunpack.c.0.s8 %v493
    %v495 = vlaneseq
    %v496 = vshrl.u32 %v495, 7
    %v497 = vsub.s32 %v494, %v496
    %v498 = vrot.slane %v491, %v497
    %v499 = vcombine.high %v498, %v498
    %v501 = vunpack.c.l.s4 1966171168
    %v502 = vunpack.c.0.s8 %v501
    %v503 = vlaneseq
    %v504 = vshrl.u32 %v503, 7
    %v505 = vsub.s32 %v502, %v504
    %v506 = vrot.slane %v498, %v505
    %v508 = vunpack.c.l.s4 1966171168
    %v509 = vunpack.c.0.s8 %v508
    %v510 = vlaneseq
    %v511 = vshrl.u32 %v510, 7
    %v512 = vsub.s32 %v509, %v511
    %v513 = vrot.slane %v499, %v512
    %v514 = vcombine.high %v506, %v506
    %v515 = vcombine.high %v513, %v513
    %v516 = vlaneseq
    %v517 = vshrl.u32 %v516, 7
    %v518 = vsub.s32 0, %v517
    %v519 = vrot.slane %v506, %v518
    %v520 = vlaneseq
    %v521 = vshrl.u32 %v520, 7
    %v522 = vsub.s32 0, %v521
    %v523 = vrot.slane %v513, %v522
    %v524 = vlaneseq
    %v525 = vshrl.u32 %v524, 7
    %v526 = vsub.s32 0, %v525
    %v527 = vrot.slane %v514, %v526
    %v528 = vlaneseq
    %v529 = vshrl.u32 %v528, 7
    %v530 = vsub.s32 0, %v529
    %v531 = vrot.slane %v515, %v530
    %v532 = vsub.s32 %v458, %v519
    %v533 = vsub.s32 %v459, %v519
    %v534 = vsub.s32 %v460, %v519
    %v535 = vsub.s32 %v461, %v519
    %v536 = vsub.s32 %v462, %v519
    %v537 = vsub.s32 %v463, %v519
    %v538 = vsub.s32 %v464, %v519
    %v539 = vsub.s32 %v465, %v519
    %v540 = vsub.s32 %v466, %v523
    %v541 = vsub.s32 %v467, %v523
    %v542 = vsub.s32 %v468, %v523
    %v543 = vsub.s32 %v469, %v523
    %v544 = vsub.s32 %v470, %v523
    %v545 = vsub.s32 %v471, %v523
    %v546 = vsub.s32 %v472, %v523
    %v547 = vsub.s32 %v473, %v523
    %v548 = vsub.s32 %v474, %v527
    %v549 = vsub.s32 %v475, %v527
    %v550 = vsub.s32 %v476, %v527
    %v551 = vsub.s32 %v477, %v527
    %v552 = vsub.s32 %v478, %v527
    %v553 = vsub.s32 %v479, %v527
    %v554 = vsub.s32 %v480, %v527
    %v555 = vsub.s32 %v481, %v527
    %v556 = vsub.s32 %v482, %v531
    %v557 = vsub.s32 %v483, %v531
    %v558 = vsub.s32 %v484, %v531
    %v559 = vsub.s32 %v485, %v531
    %v560 = vsub.s32 %v486, %v531
    %v561 = vsub.s32 %v487, %v531
    %v562 = vsub.s32 %v488, %v531
    %v563 = vsub.s32 %v489, %v531
    %v564 = vcvt.s32.f32 %v532
    %v565 = vcvt.s32.f32 %v533
    %v566 = vcvt.s32.f32 %v534
    %v567 = vcvt.s32.f32 %v535
    %v568 = vcvt.s32.f32 %v536
    %v569 = vcvt.s32.f32 %v537
    %v570 = vcvt.s32.f32 %v538
    %v571 = vcvt.s32.f32 %v539
    %v572 = vcvt.s32.f32 %v540
    %v573 = vcvt.s32.f32 %v541
    %v574 = vcvt.s32.f32 %v542
    %v575 = vcvt.s32.f32 %v543
    %v576 = vcvt.s32.f32 %v544
    %v577 = vcvt.s32.f32 %v545
    %v578 = vcvt.s32.f32 %v546
    %v579 = vcvt.s32.f32 %v547
    %v580 = vcvt.s32.f32 %v548
    %v581 = vcvt.s32.f32 %v549
    %v582 = vcvt.s32.f32 %v550
    %v583 = vcvt.s32.f32 %v551
    %v584 = vcvt.s32.f32 %v552
    %v585 = vcvt.s32.f32 %v553
    %v586 = vcvt.s32.f32 %v554
    %v587 = vcvt.s32.f32 %v555
    %v588 = vcvt.s32.f32 %v556
    %v589 = vcvt.s32.f32 %v557
    %v590 = vcvt.s32.f32 %v558
    %v591 = vcvt.s32.f32 %v559
    %v592 = vcvt.s32.f32 %v560
    %v593 = vcvt.s32.f32 %v561
    %v594 = vcvt.s32.f32 %v562
    %v595 = vcvt.s32.f32 %v563
    %v598 = vunpack.c.l.s4 1966171168
    %v599 = vunpack.c.0.s8 %v598
    %v600 = vlaneseq
    %v601 = vshrl.u32 %v600, 7
    %v602 = vsub.s32 %v599, %v601
    %v603 = vrot.slane %v130, %v602
    %v604 = vcombine.high %v603, %v603
    %v606 = vunpack.c.l.s4 1966171168
    %v607 = vunpack.c.0.s8 %v606
    %v608 = vlaneseq
    %v609 = vshrl.u32 %v608, 7
    %v610 = vsub.s32 %v607, %v609
    %v611 = vrot.slane %v603, %v610
    %v613 = vunpack.c.l.s4 1966171168
    %v614 = vunpack.c.0.s8 %v613
    %v615 = vlaneseq
    %v616 = vshrl.u32 %v615, 7
    %v617 = vsub.s32 %v614, %v616
    %v618 = vrot.slane %v604, %v617
    %v619 = vcombine.high %v611, %v611
    %v620 = vcombine.high %v618, %v618
    %v621 = vlaneseq
    %v622 = vshrl.u32 %v621, 7
    %v623 = vsub.s32 0, %v622
    %v624 = vrot.slane %v611, %v623
    %v625 = vlaneseq
    %v626 = vshrl.u32 %v625, 7
    %v627 = vsub.s32 0, %v626
    %v628 = vrot.slane %v618, %v627
    %v629 = vlaneseq
    %v630 = vshrl.u32 %v629, 7
    %v631 = vsub.s32 0, %v630
    %v632 = vrot.slane %v619, %v631
    %v633 = vlaneseq
    %v634 = vshrl.u32 %v633, 7
    %v635 = vsub.s32 0, %v634
    %v636 = vrot.slane %v620, %v635
    %v641 = vmul.f32 %v564, %v624
    %v642 = vmul.f32 %v565, %v624
    %v643 = vmul.f32 %v566, %v624
    %v644 = vmul.f32 %v567, %v624
    %v645 = vmul.f32 %v568, %v624
    %v646 = vmul.f32 %v569, %v624
    %v647 = vmul.f32 %v570, %v624
    %v648 = vmul.f32 %v571, %v624
    %v649 = vmul.f32 %v572, %v628
    %v650 = vmul.f32 %v573, %v628
    %v651 = vmul.f32 %v574, %v628
    %v652 = vmul.f32 %v575, %v628
    %v653 = vmul.f32 %v576, %v628
    %v654 = vmul.f32 %v577, %v628
    %v655 = vmul.f32 %v578, %v628
    %v656 = vmul.f32 %v579, %v628
    %v657 = vmul.f32 %v580, %v632
    %v658 = vmul.f32 %v581, %v632
    %v659 = vmul.f32 %v582, %v632
    %v660 = vmul.f32 %v583, %v632
    %v661 = vmul.f32 %v584, %v632
    %v662 = vmul.f32 %v585, %v632
    %v663 = vmul.f32 %v586, %v632
    %v664 = vmul.f32 %v587, %v632
    %v665 = vmul.f32 %v588, %v636
    %v666 = vmul.f32 %v589, %v636
    %v667 = vmul.f32 %v590, %v636
    %v668 = vmul.f32 %v591, %v636
    %v669 = vmul.f32 %v592, %v636
    %v670 = vmul.f32 %v593, %v636
    %v671 = vmul.f32 %v594, %v636
    %v672 = vmul.f32 %v595, %v636
    %v673 = vpack.c.bf16 %v642, %v641
    %v674 = vpack.c.bf16 %v644, %v643
    %v675 = vpack.c.bf16 %v646, %v645
    %v676 = vpack.c.bf16 %v648, %v647
    %v677 = vpack.c.bf16 %v650, %v649
    %v678 = vpack.c.bf16 %v652, %v651
    %v679 = vpack.c.bf16 %v654, %v653
    %v680 = vpack.c.bf16 %v656, %v655
    %v681 = vpack.c.bf16 %v658, %v657
    %v682 = vpack.c.bf16 %v660, %v659
    %v683 = vpack.c.bf16 %v662, %v661
    %v684 = vpack.c.bf16 %v664, %v663
    %v685 = vpack.c.bf16 %v666, %v665
    %v686 = vpack.c.bf16 %v668, %v667
    %v687 = vpack.c.bf16 %v670, %v669
    %v688 = vpack.c.bf16 %v672, %v671
    %v689 = vlaneseq
    %v690 = vshrl.u32 %v689, 7
    %v691 = vsub.s32 1, %v690
    %v692 = vrot.slane %v137, %v691
    %693 = vmatprep.subr.bf16.mxu0 0
    %694 = vmatpush1.bf16.msra.mxu0 %v673
    %695 = vmatprep.subr.bf16.mxu0 0
    %696 = vmatpush1.bf16.msra.mxu0 %v674
    %697 = vmatprep.subr.bf16.mxu0 0
    %698 = vmatpush1.bf16.msra.mxu0 %v675
    %699 = vmatprep.subr.bf16.mxu0 0
    %700 = vmatpush1.bf16.msra.mxu0 %v676
    %701 = vmatprep.subr.bf16.mxu0 0
    %702 = vmatpush1.bf16.msra.mxu0 %v677
    %703 = vmatprep.subr.bf16.mxu0 0
    %704 = vmatpush1.bf16.msra.mxu0 %v678
    %705 = vmatprep.subr.bf16.mxu0 0
    %706 = vmatpush1.bf16.msra.mxu0 %v679
    %707 = vmatprep.subr.bf16.mxu0 0
    %708 = vmatpush1.bf16.msra.mxu0 %v680
    %709 = vmatprep.subr.bf16.mxu0 0
    %710 = vmatpush1.bf16.msra.mxu0 %v681
    %711 = vmatprep.subr.bf16.mxu0 0
    %712 = vmatpush1.bf16.msra.mxu0 %v682
    %713 = vmatprep.subr.bf16.mxu0 0
    %714 = vmatpush1.bf16.msra.mxu0 %v683
    %715 = vmatprep.subr.bf16.mxu0 0
    %716 = vmatpush1.bf16.msra.mxu0 %v684
    %717 = vmatprep.subr.bf16.mxu0 0
    %718 = vmatpush1.bf16.msra.mxu0 %v685
    %719 = vmatprep.subr.bf16.mxu0 0
    %720 = vmatpush1.bf16.msra.mxu0 %v686
    %721 = vmatprep.subr.bf16.mxu0 0
    %722 = vmatpush1.bf16.msra.mxu0 %v687
    %723 = vmatprep.subr.bf16.mxu0 0
    %724 = vmatpush1.bf16.msra.mxu0 %v688
    %725 = vmatprep.mubr.bf16.mxu0 %v379
    %726 = vmatmul.mubr.bf16.gmra.mrb[0].mxu0 %v378
    %v727 = vpop.f32.mrb[0].mxu0
    %v728 = vadd.f32 %v692, %v727
    %v729 = vpop.f32.mrb[0].mxu0
    %v730 = vpop.f32.mrb[0].mxu0
    %v731 = vadd.f32 %v692, %v730
    %v732 = vpop.f32.mrb[0].mxu0
    %733 = vdwg.mxu0
    %s734 = scalar_lea.vmem [#allocation11], 16
    %735 = vst.msk [vmem:[%s734] sm:$0xff] %vm423, %v728
    %736 = vst.msk [vmem:[%s734 + $0x8] sm:$0xff] %vm423, %v731
    %v737 = vshra.s32 %v88, 4
    %v738 = vshra.s32 %v89, 4
    %v739 = vshra.s32 %v90, 4
    %v740 = vshra.s32 %v91, 4
    %v741 = vshra.s32 %v92, 4
    %v742 = vshra.s32 %v93, 4
    %v743 = vshra.s32 %v94, 4
    %v744 = vshra.s32 %v95, 4
    %v745 = vshra.s32 %v96, 4
    %v746 = vshra.s32 %v97, 4
    %v747 = vshra.s32 %v98, 4
    %v748 = vshra.s32 %v99, 4
    %v749 = vshra.s32 %v100, 4
    %v750 = vshra.s32 %v101, 4
    %v751 = vshra.s32 %v102, 4
    %v752 = vshra.s32 %v103, 4
    %v753 = vshra.s32 %v104, 4
    %v754 = vshra.s32 %v105, 4
    %v755 = vshra.s32 %v106, 4
    %v756 = vshra.s32 %v107, 4
    %v757 = vshra.s32 %v108, 4
    %v758 = vshra.s32 %v109, 4
    %v759 = vshra.s32 %v110, 4
    %v760 = vshra.s32 %v111, 4
    %v761 = vshra.s32 %v112, 4
    %v762 = vshra.s32 %v113, 4
    %v763 = vshra.s32 %v114, 4
    %v764 = vshra.s32 %v115, 4
    %v765 = vshra.s32 %v116, 4
    %v766 = vshra.s32 %v117, 4
    %v767 = vshra.s32 %v118, 4
    %v768 = vshra.s32 %v119, 4
    %v769 = vand.u32 %v737, 15
    %v770 = vand.u32 %v738, 15
    %v771 = vand.u32 %v739, 15
    %v772 = vand.u32 %v740, 15
    %v773 = vand.u32 %v741, 15
    %v774 = vand.u32 %v742, 15
    %v775 = vand.u32 %v743, 15
    %v776 = vand.u32 %v744, 15
    %v777 = vand.u32 %v745, 15
    %v778 = vand.u32 %v746, 15
    %v779 = vand.u32 %v747, 15
    %v780 = vand.u32 %v748, 15
    %v781 = vand.u32 %v749, 15
    %v782 = vand.u32 %v750, 15
    %v783 = vand.u32 %v751, 15
    %v784 = vand.u32 %v752, 15
    %v785 = vand.u32 %v753, 15
    %v786 = vand.u32 %v754, 15
    %v787 = vand.u32 %v755, 15
    %v788 = vand.u32 %v756, 15
    %v789 = vand.u32 %v757, 15
    %v790 = vand.u32 %v758, 15
    %v791 = vand.u32 %v759, 15
    %v792 = vand.u32 %v760, 15
    %v793 = vand.u32 %v761, 15
    %v794 = vand.u32 %v762, 15
    %v795 = vand.u32 %v763, 15
    %v796 = vand.u32 %v764, 15
    %v797 = vand.u32 %v765, 15
    %v798 = vand.u32 %v766, 15
    %v799 = vand.u32 %v767, 15
    %v800 = vand.u32 %v768, 15
    %v801 = vshra.s32 %v120, 4
    %v802 = vand.u32 %v801, 15
    %v804 = vunpack.c.l.s4 1966171168
    %v805 = vunpack.c.0.s8 %v804
    %v806 = vlaneseq
    %v807 = vshrl.u32 %v806, 7
    %v808 = vsub.s32 %v805, %v807
    %v809 = vrot.slane %v802, %v808
    %v810 = vcombine.high %v809, %v809
    %v812 = vunpack.c.l.s4 1966171168
    %v813 = vunpack.c.0.s8 %v812
    %v814 = vlaneseq
    %v815 = vshrl.u32 %v814, 7
    %v816 = vsub.s32 %v813, %v815
    %v817 = vrot.slane %v809, %v816
    %v819 = vunpack.c.l.s4 1966171168
    %v820 = vunpack.c.0.s8 %v819
    %v821 = vlaneseq
    %v822 = vshrl.u32 %v821, 7
    %v823 = vsub.s32 %v820, %v822
    %v824 = vrot.slane %v810, %v823
    %v825 = vcombine.high %v817, %v817
    %v826 = vcombine.high %v824, %v824
    %v827 = vlaneseq
    %v828 = vshrl.u32 %v827, 7
    %v829 = vsub.s32 0, %v828
    %v830 = vrot.slane %v817, %v829
    %v831 = vlaneseq
    %v832 = vshrl.u32 %v831, 7
    %v833 = vsub.s32 0, %v832
    %v834 = vrot.slane %v824, %v833
    %v835 = vlaneseq
    %v836 = vshrl.u32 %v835, 7
    %v837 = vsub.s32 0, %v836
    %v838 = vrot.slane %v825, %v837
    %v839 = vlaneseq
    %v840 = vshrl.u32 %v839, 7
    %v841 = vsub.s32 0, %v840
    %v842 = vrot.slane %v826, %v841
    %v843 = vsub.s32 %v769, %v830
    %v844 = vsub.s32 %v770, %v830
    %v845 = vsub.s32 %v771, %v830
    %v846 = vsub.s32 %v772, %v830
    %v847 = vsub.s32 %v773, %v830
    %v848 = vsub.s32 %v774, %v830
    %v849 = vsub.s32 %v775, %v830
    %v850 = vsub.s32 %v776, %v830
    %v851 = vsub.s32 %v777, %v834
    %v852 = vsub.s32 %v778, %v834
    %v853 = vsub.s32 %v779, %v834
    %v854 = vsub.s32 %v780, %v834
    %v855 = vsub.s32 %v781, %v834
    %v856 = vsub.s32 %v782, %v834
    %v857 = vsub.s32 %v783, %v834
    %v858 = vsub.s32 %v784, %v834
    %v859 = vsub.s32 %v785, %v838
    %v860 = vsub.s32 %v786, %v838
    %v861 = vsub.s32 %v787, %v838
    %v862 = vsub.s32 %v788, %v838
    %v863 = vsub.s32 %v789, %v838
    %v864 = vsub.s32 %v790, %v838
    %v865 = vsub.s32 %v791, %v838
    %v866 = vsub.s32 %v792, %v838
    %v867 = vsub.s32 %v793, %v842
    %v868 = vsub.s32 %v794, %v842
    %v869 = vsub.s32 %v795, %v842
    %v870 = vsub.s32 %v796, %v842
    %v871 = vsub.s32 %v797, %v842
    %v872 = vsub.s32 %v798, %v842
    %v873 = vsub.s32 %v799, %v842
    %v874 = vsub.s32 %v800, %v842
    %v875 = vcvt.s32.f32 %v843
    %v876 = vcvt.s32.f32 %v844
    %v877 = vcvt.s32.f32 %v845
    %v878 = vcvt.s32.f32 %v846
    %v879 = vcvt.s32.f32 %v847
    %v880 = vcvt.s32.f32 %v848
    %v881 = vcvt.s32.f32 %v849
    %v882 = vcvt.s32.f32 %v850
    %v883 = vcvt.s32.f32 %v851
    %v884 = vcvt.s32.f32 %v852
    %v885 = vcvt.s32.f32 %v853
    %v886 = vcvt.s32.f32 %v854
    %v887 = vcvt.s32.f32 %v855
    %v888 = vcvt.s32.f32 %v856
    %v889 = vcvt.s32.f32 %v857
    %v890 = vcvt.s32.f32 %v858
    %v891 = vcvt.s32.f32 %v859
    %v892 = vcvt.s32.f32 %v860
    %v893 = vcvt.s32.f32 %v861
    %v894 = vcvt.s32.f32 %v862
    %v895 = vcvt.s32.f32 %v863
    %v896 = vcvt.s32.f32 %v864
    %v897 = vcvt.s32.f32 %v865
    %v898 = vcvt.s32.f32 %v866
    %v899 = vcvt.s32.f32 %v867
    %v900 = vcvt.s32.f32 %v868
    %v901 = vcvt.s32.f32 %v869
    %v902 = vcvt.s32.f32 %v870
    %v903 = vcvt.s32.f32 %v871
    %v904 = vcvt.s32.f32 %v872
    %v905 = vcvt.s32.f32 %v873
    %v906 = vcvt.s32.f32 %v874
    %v909 = vunpack.c.l.s4 1966171168
    %v910 = vunpack.c.0.s8 %v909
    %v911 = vlaneseq
    %v912 = vshrl.u32 %v911, 7
    %v913 = vsub.s32 %v910, %v912
    %v914 = vrot.slane %v131, %v913
    %v915 = vcombine.high %v914, %v914
    %v917 = vunpack.c.l.s4 1966171168
    %v918 = vunpack.c.0.s8 %v917
    %v919 = vlaneseq
    %v920 = vshrl.u32 %v919, 7
    %v921 = vsub.s32 %v918, %v920
    %v922 = vrot.slane %v914, %v921
    %v924 = vunpack.c.l.s4 1966171168
    %v925 = vunpack.c.0.s8 %v924
    %v926 = vlaneseq
    %v927 = vshrl.u32 %v926, 7
    %v928 = vsub.s32 %v925, %v927
    %v929 = vrot.slane %v915, %v928
    %v930 = vcombine.high %v922, %v922
    %v931 = vcombine.high %v929, %v929
    %v932 = vlaneseq
    %v933 = vshrl.u32 %v932, 7
    %v934 = vsub.s32 0, %v933
    %v935 = vrot.slane %v922, %v934
    %v936 = vlaneseq
    %v937 = vshrl.u32 %v936, 7
    %v938 = vsub.s32 0, %v937
    %v939 = vrot.slane %v929, %v938
    %v940 = vlaneseq
    %v941 = vshrl.u32 %v940, 7
    %v942 = vsub.s32 0, %v941
    %v943 = vrot.slane %v930, %v942
    %v944 = vlaneseq
    %v945 = vshrl.u32 %v944, 7
    %v946 = vsub.s32 0, %v945
    %v947 = vrot.slane %v931, %v946
    %v952 = vmul.f32 %v875, %v935
    %v953 = vmul.f32 %v876, %v935
    %v954 = vmul.f32 %v877, %v935
    %v955 = vmul.f32 %v878, %v935
    %v956 = vmul.f32 %v879, %v935
    %v957 = vmul.f32 %v880, %v935
    %v958 = vmul.f32 %v881, %v935
    %v959 = vmul.f32 %v882, %v935
    %v960 = vmul.f32 %v883, %v939
    %v961 = vmul.f32 %v884, %v939
    %v962 = vmul.f32 %v885, %v939
    %v963 = vmul.f32 %v886, %v939
    %v964 = vmul.f32 %v887, %v939
    %v965 = vmul.f32 %v888, %v939
    %v966 = vmul.f32 %v889, %v939
    %v967 = vmul.f32 %v890, %v939
    %v968 = vmul.f32 %v891, %v943
    %v969 = vmul.f32 %v892, %v943
    %v970 = vmul.f32 %v893, %v943
    %v971 = vmul.f32 %v894, %v943
    %v972 = vmul.f32 %v895, %v943
    %v973 = vmul.f32 %v896, %v943
    %v974 = vmul.f32 %v897, %v943
    %v975 = vmul.f32 %v898, %v943
    %v976 = vmul.f32 %v899, %v947
    %v977 = vmul.f32 %v900, %v947
    %v978 = vmul.f32 %v901, %v947
    %v979 = vmul.f32 %v902, %v947
    %v980 = vmul.f32 %v903, %v947
    %v981 = vmul.f32 %v904, %v947
    %v982 = vmul.f32 %v905, %v947
    %v983 = vmul.f32 %v906, %v947
    %v984 = vpack.c.bf16 %v953, %v952
    %v985 = vpack.c.bf16 %v955, %v954
    %v986 = vpack.c.bf16 %v957, %v956
    %v987 = vpack.c.bf16 %v959, %v958
    %v988 = vpack.c.bf16 %v961, %v960
    %v989 = vpack.c.bf16 %v963, %v962
    %v990 = vpack.c.bf16 %v965, %v964
    %v991 = vpack.c.bf16 %v967, %v966
    %v992 = vpack.c.bf16 %v969, %v968
    %v993 = vpack.c.bf16 %v971, %v970
    %v994 = vpack.c.bf16 %v973, %v972
    %v995 = vpack.c.bf16 %v975, %v974
    %v996 = vpack.c.bf16 %v977, %v976
    %v997 = vpack.c.bf16 %v979, %v978
    %v998 = vpack.c.bf16 %v981, %v980
    %v999 = vpack.c.bf16 %v983, %v982
    %v1000 = vlaneseq
    %v1001 = vshrl.u32 %v1000, 7
    %v1002 = vsub.s32 2, %v1001
    %v1003 = vrot.slane %v137, %v1002
    %1004 = vmatprep.subr.bf16.mxu0 0
    %1005 = vmatpush1.bf16.msra.mxu0 %v984
    %1006 = vmatprep.subr.bf16.mxu0 0
    %1007 = vmatpush1.bf16.msra.mxu0 %v985
    %1008 = vmatprep.subr.bf16.mxu0 0
    %1009 = vmatpush1.bf16.msra.mxu0 %v986
    %1010 = vmatprep.subr.bf16.mxu0 0
    %1011 = vmatpush1.bf16.msra.mxu0 %v987
    %1012 = vmatprep.subr.bf16.mxu0 0
    %1013 = vmatpush1.bf16.msra.mxu0 %v988
    %1014 = vmatprep.subr.bf16.mxu0 0
    %1015 = vmatpush1.bf16.msra.mxu0 %v989
    %1016 = vmatprep.subr.bf16.mxu0 0
    %1017 = vmatpush1.bf16.msra.mxu0 %v990
    %1018 = vmatprep.subr.bf16.mxu0 0
    %1019 = vmatpush1.bf16.msra.mxu0 %v991
    %1020 = vmatprep.subr.bf16.mxu0 0
    %1021 = vmatpush1.bf16.msra.mxu0 %v992
    %1022 = vmatprep.subr.bf16.mxu0 0
    %1023 = vmatpush1.bf16.msra.mxu0 %v993
    %1024 = vmatprep.subr.bf16.mxu0 0
    %1025 = vmatpush1.bf16.msra.mxu0 %v994
    %1026 = vmatprep.subr.bf16.mxu0 0
    %1027 = vmatpush1.bf16.msra.mxu0 %v995
    %1028 = vmatprep.subr.bf16.mxu0 0
    %1029 = vmatpush1.bf16.msra.mxu0 %v996
    %1030 = vmatprep.subr.bf16.mxu0 0
    %1031 = vmatpush1.bf16.msra.mxu0 %v997
    %1032 = vmatprep.subr.bf16.mxu0 0
    %1033 = vmatpush1.bf16.msra.mxu0 %v998
    %1034 = vmatprep.subr.bf16.mxu0 0
    %1035 = vmatpush1.bf16.msra.mxu0 %v999
    %1036 = vmatprep.mubr.bf16.mxu0 %v379
    %1037 = vmatmul.mubr.bf16.gmra.mrb[0].mxu0 %v378
    %v1038 = vpop.f32.mrb[0].mxu0
    %v1039 = vadd.f32 %v1003, %v1038
    %v1040 = vpop.f32.mrb[0].mxu0
    %v1041 = vpop.f32.mrb[0].mxu0
    %v1042 = vadd.f32 %v1003, %v1041
    %v1043 = vpop.f32.mrb[0].mxu0
    %1044 = vdwg.mxu0
    %s1045 = scalar_lea.vmem [#allocation11], 32
    %1046 = vst.msk [vmem:[%s1045] sm:$0xff] %vm423, %v1039
    %1047 = vst.msk [vmem:[%s1045 + $0x8] sm:$0xff] %vm423, %v1042
    %v1048 = vshra.s32 %v88, 20
    %v1049 = vshra.s32 %v89, 20
    %v1050 = vshra.s32 %v90, 20
    %v1051 = vshra.s32 %v91, 20
    %v1052 = vshra.s32 %v92, 20
    %v1053 = vshra.s32 %v93, 20
    %v1054 = vshra.s32 %v94, 20
    %v1055 = vshra.s32 %v95, 20
    %v1056 = vshra.s32 %v96, 20
    %v1057 = vshra.s32 %v97, 20
    %v1058 = vshra.s32 %v98, 20
    %v1059 = vshra.s32 %v99, 20
    %v1060 = vshra.s32 %v100, 20
    %v1061 = vshra.s32 %v101, 20
    %v1062 = vshra.s32 %v102, 20
    %v1063 = vshra.s32 %v103, 20
    %v1064 = vshra.s32 %v104, 20
    %v1065 = vshra.s32 %v105, 20
    %v1066 = vshra.s32 %v106, 20
    %v1067 = vshra.s32 %v107, 20
    %v1068 = vshra.s32 %v108, 20
    %v1069 = vshra.s32 %v109, 20
    %v1070 = vshra.s32 %v110, 20
    %v1071 = vshra.s32 %v111, 20
    %v1072 = vshra.s32 %v112, 20
    %v1073 = vshra.s32 %v113, 20
    %v1074 = vshra.s32 %v114, 20
    %v1075 = vshra.s32 %v115, 20
    %v1076 = vshra.s32 %v116, 20
    %v1077 = vshra.s32 %v117, 20
    %v1078 = vshra.s32 %v118, 20
    %v1079 = vshra.s32 %v119, 20
    %v1080 = vand.u32 %v1048, 15
    %v1081 = vand.u32 %v1049, 15
    %v1082 = vand.u32 %v1050, 15
    %v1083 = vand.u32 %v1051, 15
    %v1084 = vand.u32 %v1052, 15
    %v1085 = vand.u32 %v1053, 15
    %v1086 = vand.u32 %v1054, 15
    %v1087 = vand.u32 %v1055, 15
    %v1088 = vand.u32 %v1056, 15
    %v1089 = vand.u32 %v1057, 15
    %v1090 = vand.u32 %v1058, 15
    %v1091 = vand.u32 %v1059, 15
    %v1092 = vand.u32 %v1060, 15
    %v1093 = vand.u32 %v1061, 15
    %v1094 = vand.u32 %v1062, 15
    %v1095 = vand.u32 %v1063, 15
    %v1096 = vand.u32 %v1064, 15
    %v1097 = vand.u32 %v1065, 15
    %v1098 = vand.u32 %v1066, 15
    %v1099 = vand.u32 %v1067, 15
    %v1100 = vand.u32 %v1068, 15
    %v1101 = vand.u32 %v1069, 15
    %v1102 = vand.u32 %v1070, 15
    %v1103 = vand.u32 %v1071, 15
    %v1104 = vand.u32 %v1072, 15
    %v1105 = vand.u32 %v1073, 15
    %v1106 = vand.u32 %v1074, 15
    %v1107 = vand.u32 %v1075, 15
    %v1108 = vand.u32 %v1076, 15
    %v1109 = vand.u32 %v1077, 15
    %v1110 = vand.u32 %v1078, 15
    %v1111 = vand.u32 %v1079, 15
    %v1112 = vshra.s32 %v120, 20
    %v1113 = vand.u32 %v1112, 15
    %v1115 = vunpack.c.l.s4 1966171168
    %v1116 = vunpack.c.0.s8 %v1115
    %v1117 = vlaneseq
    %v1118 = vshrl.u32 %v1117, 7
    %v1119 = vsub.s32 %v1116, %v1118
    %v1120 = vrot.slane %v1113, %v1119
    %v1121 = vcombine.high %v1120, %v1120
    %v1123 = vunpack.c.l.s4 1966171168
    %v1124 = vunpack.c.0.s8 %v1123
    %v1125 = vlaneseq
    %v1126 = vshrl.u32 %v1125, 7
    %v1127 = vsub.s32 %v1124, %v1126
    %v1128 = vrot.slane %v1120, %v1127
    %v1130 = vunpack.c.l.s4 1966171168
    %v1131 = vunpack.c.0.s8 %v1130
    %v1132 = vlaneseq
    %v1133 = vshrl.u32 %v1132, 7
    %v1134 = vsub.s32 %v1131, %v1133
    %v1135 = vrot.slane %v1121, %v1134
    %v1136 = vcombine.high %v1128, %v1128
    %v1137 = vcombine.high %v1135, %v1135
    %v1138 = vlaneseq
    %v1139 = vshrl.u32 %v1138, 7
    %v1140 = vsub.s32 0, %v1139
    %v1141 = vrot.slane %v1128, %v1140
    %v1142 = vlaneseq
    %v1143 = vshrl.u32 %v1142, 7
    %v1144 = vsub.s32 0, %v1143
    %v1145 = vrot.slane %v1135, %v1144
    %v1146 = vlaneseq
    %v1147 = vshrl.u32 %v1146, 7
    %v1148 = vsub.s32 0, %v1147
    %v1149 = vrot.slane %v1136, %v1148
    %v1150 = vlaneseq
    %v1151 = vshrl.u32 %v1150, 7
    %v1152 = vsub.s32 0, %v1151
    %v1153 = vrot.slane %v1137, %v1152
    %v1154 = vsub.s32 %v1080, %v1141
    %v1155 = vsub.s32 %v1081, %v1141
    %v1156 = vsub.s32 %v1082, %v1141
    %v1157 = vsub.s32 %v1083, %v1141
    %v1158 = vsub.s32 %v1084, %v1141
    %v1159 = vsub.s32 %v1085, %v1141
    %v1160 = vsub.s32 %v1086, %v1141
    %v1161 = vsub.s32 %v1087, %v1141
    %v1162 = vsub.s32 %v1088, %v1145
    %v1163 = vsub.s32 %v1089, %v1145
    %v1164 = vsub.s32 %v1090, %v1145
    %v1165 = vsub.s32 %v1091, %v1145
    %v1166 = vsub.s32 %v1092, %v1145
    %v1167 = vsub.s32 %v1093, %v1145
    %v1168 = vsub.s32 %v1094, %v1145
    %v1169 = vsub.s32 %v1095, %v1145
    %v1170 = vsub.s32 %v1096, %v1149
    %v1171 = vsub.s32 %v1097, %v1149
    %v1172 = vsub.s32 %v1098, %v1149
    %v1173 = vsub.s32 %v1099, %v1149
    %v1174 = vsub.s32 %v1100, %v1149
    %v1175 = vsub.s32 %v1101, %v1149
    %v1176 = vsub.s32 %v1102, %v1149
    %v1177 = vsub.s32 %v1103, %v1149
    %v1178 = vsub.s32 %v1104, %v1153
    %v1179 = vsub.s32 %v1105, %v1153
    %v1180 = vsub.s32 %v1106, %v1153
    %v1181 = vsub.s32 %v1107, %v1153
    %v1182 = vsub.s32 %v1108, %v1153
    %v1183 = vsub.s32 %v1109, %v1153
    %v1184 = vsub.s32 %v1110, %v1153
    %v1185 = vsub.s32 %v1111, %v1153
    %v1186 = vcvt.s32.f32 %v1154
    %v1187 = vcvt.s32.f32 %v1155
    %v1188 = vcvt.s32.f32 %v1156
    %v1189 = vcvt.s32.f32 %v1157
    %v1190 = vcvt.s32.f32 %v1158
    %v1191 = vcvt.s32.f32 %v1159
    %v1192 = vcvt.s32.f32 %v1160
    %v1193 = vcvt.s32.f32 %v1161
    %v1194 = vcvt.s32.f32 %v1162
    %v1195 = vcvt.s32.f32 %v1163
    %v1196 = vcvt.s32.f32 %v1164
    %v1197 = vcvt.s32.f32 %v1165
    %v1198 = vcvt.s32.f32 %v1166
    %v1199 = vcvt.s32.f32 %v1167
    %v1200 = vcvt.s32.f32 %v1168
    %v1201 = vcvt.s32.f32 %v1169
    %v1202 = vcvt.s32.f32 %v1170
    %v1203 = vcvt.s32.f32 %v1171
    %v1204 = vcvt.s32.f32 %v1172
    %v1205 = vcvt.s32.f32 %v1173
    %v1206 = vcvt.s32.f32 %v1174
    %v1207 = vcvt.s32.f32 %v1175
    %v1208 = vcvt.s32.f32 %v1176
    %v1209 = vcvt.s32.f32 %v1177
    %v1210 = vcvt.s32.f32 %v1178
    %v1211 = vcvt.s32.f32 %v1179
    %v1212 = vcvt.s32.f32 %v1180
    %v1213 = vcvt.s32.f32 %v1181
    %v1214 = vcvt.s32.f32 %v1182
    %v1215 = vcvt.s32.f32 %v1183
    %v1216 = vcvt.s32.f32 %v1184
    %v1217 = vcvt.s32.f32 %v1185
    %v1220 = vunpack.c.l.s4 1966171168
    %v1221 = vunpack.c.0.s8 %v1220
    %v1222 = vlaneseq
    %v1223 = vshrl.u32 %v1222, 7
    %v1224 = vsub.s32 %v1221, %v1223
    %v1225 = vrot.slane %v132, %v1224
    %v1226 = vcombine.high %v1225, %v1225
    %v1228 = vunpack.c.l.s4 1966171168
    %v1229 = vunpack.c.0.s8 %v1228
    %v1230 = vlaneseq
    %v1231 = vshrl.u32 %v1230, 7
    %v1232 = vsub.s32 %v1229, %v1231
    %v1233 = vrot.slane %v1225, %v1232
    %v1235 = vunpack.c.l.s4 1966171168
    %v1236 = vunpack.c.0.s8 %v1235
    %v1237 = vlaneseq
    %v1238 = vshrl.u32 %v1237, 7
    %v1239 = vsub.s32 %v1236, %v1238
    %v1240 = vrot.slane %v1226, %v1239
    %v1241 = vcombine.high %v1233, %v1233
    %v1242 = vcombine.high %v1240, %v1240
    %v1243 = vlaneseq
    %v1244 = vshrl.u32 %v1243, 7
    %v1245 = vsub.s32 0, %v1244
    %v1246 = vrot.slane %v1233, %v1245
    %v1247 = vlaneseq
    %v1248 = vshrl.u32 %v1247, 7
    %v1249 = vsub.s32 0, %v1248
    %v1250 = vrot.slane %v1240, %v1249
    %v1251 = vlaneseq
    %v1252 = vshrl.u32 %v1251, 7
    %v1253 = vsub.s32 0, %v1252
    %v1254 = vrot.slane %v1241, %v1253
    %v1255 = vlaneseq
    %v1256 = vshrl.u32 %v1255, 7
    %v1257 = vsub.s32 0, %v1256
    %v1258 = vrot.slane %v1242, %v1257
    %v1263 = vmul.f32 %v1186, %v1246
    %v1264 = vmul.f32 %v1187, %v1246
    %v1265 = vmul.f32 %v1188, %v1246
    %v1266 = vmul.f32 %v1189, %v1246
    %v1267 = vmul.f32 %v1190, %v1246
    %v1268 = vmul.f32 %v1191, %v1246
    %v1269 = vmul.f32 %v1192, %v1246
    %v1270 = vmul.f32 %v1193, %v1246
    %v1271 = vmul.f32 %v1194, %v1250
    %v1272 = vmul.f32 %v1195, %v1250
    %v1273 = vmul.f32 %v1196, %v1250
    %v1274 = vmul.f32 %v1197, %v1250
    %v1275 = vmul.f32 %v1198, %v1250
    %v1276 = vmul.f32 %v1199, %v1250
    %v1277 = vmul.f32 %v1200, %v1250
    %v1278 = vmul.f32 %v1201, %v1250
    %v1279 = vmul.f32 %v1202, %v1254
    %v1280 = vmul.f32 %v1203, %v1254
    %v1281 = vmul.f32 %v1204, %v1254
    %v1282 = vmul.f32 %v1205, %v1254
    %v1283 = vmul.f32 %v1206, %v1254
    %v1284 = vmul.f32 %v1207, %v1254
    %v1285 = vmul.f32 %v1208, %v1254
    %v1286 = vmul.f32 %v1209, %v1254
    %v1287 = vmul.f32 %v1210, %v1258
    %v1288 = vmul.f32 %v1211, %v1258
    %v1289 = vmul.f32 %v1212, %v1258
    %v1290 = vmul.f32 %v1213, %v1258
    %v1291 = vmul.f32 %v1214, %v1258
    %v1292 = vmul.f32 %v1215, %v1258
    %v1293 = vmul.f32 %v1216, %v1258
    %v1294 = vmul.f32 %v1217, %v1258
    %v1295 = vpack.c.bf16 %v1264, %v1263
    %v1296 = vpack.c.bf16 %v1266, %v1265
    %v1297 = vpack.c.bf16 %v1268, %v1267
    %v1298 = vpack.c.bf16 %v1270, %v1269
    %v1299 = vpack.c.bf16 %v1272, %v1271
    %v1300 = vpack.c.bf16 %v1274, %v1273
    %v1301 = vpack.c.bf16 %v1276, %v1275
    %v1302 = vpack.c.bf16 %v1278, %v1277
    %v1303 = vpack.c.bf16 %v1280, %v1279
    %v1304 = vpack.c.bf16 %v1282, %v1281
    %v1305 = vpack.c.bf16 %v1284, %v1283
    %v1306 = vpack.c.bf16 %v1286, %v1285
    %v1307 = vpack.c.bf16 %v1288, %v1287
    %v1308 = vpack.c.bf16 %v1290, %v1289
    %v1309 = vpack.c.bf16 %v1292, %v1291
    %v1310 = vpack.c.bf16 %v1294, %v1293
    %v1311 = vlaneseq
    %v1312 = vshrl.u32 %v1311, 7
    %v1313 = vsub.s32 3, %v1312
    %v1314 = vrot.slane %v137, %v1313
    %1315 = vmatprep.subr.bf16.mxu0 0
    %1316 = vmatpush1.bf16.msra.mxu0 %v1295
    %1317 = vmatprep.subr.bf16.mxu0 0
    %1318 = vmatpush1.bf16.msra.mxu0 %v1296
    %1319 = vmatprep.subr.bf16.mxu0 0
    %1320 = vmatpush1.bf16.msra.mxu0 %v1297
    %1321 = vmatprep.subr.bf16.mxu0 0
    %1322 = vmatpush1.bf16.msra.mxu0 %v1298
    %1323 = vmatprep.subr.bf16.mxu0 0
    %1324 = vmatpush1.bf16.msra.mxu0 %v1299
    %1325 = vmatprep.subr.bf16.mxu0 0
    %1326 = vmatpush1.bf16.msra.mxu0 %v1300
    %1327 = vmatprep.subr.bf16.mxu0 0
    %1328 = vmatpush1.bf16.msra.mxu0 %v1301
    %1329 = vmatprep.subr.bf16.mxu0 0
    %1330 = vmatpush1.bf16.msra.mxu0 %v1302
    %1331 = vmatprep.subr.bf16.mxu0 0
    %1332 = vmatpush1.bf16.msra.mxu0 %v1303
    %1333 = vmatprep.subr.bf16.mxu0 0
    %1334 = vmatpush1.bf16.msra.mxu0 %v1304
    %1335 = vmatprep.subr.bf16.mxu0 0
    %1336 = vmatpush1.bf16.msra.mxu0 %v1305
    %1337 = vmatprep.subr.bf16.mxu0 0
    %1338 = vmatpush1.bf16.msra.mxu0 %v1306
    %1339 = vmatprep.subr.bf16.mxu0 0
    %1340 = vmatpush1.bf16.msra.mxu0 %v1307
    %1341 = vmatprep.subr.bf16.mxu0 0
    %1342 = vmatpush1.bf16.msra.mxu0 %v1308
    %1343 = vmatprep.subr.bf16.mxu0 0
    %1344 = vmatpush1.bf16.msra.mxu0 %v1309
    %1345 = vmatprep.subr.bf16.mxu0 0
    %1346 = vmatpush1.bf16.msra.mxu0 %v1310
    %1347 = vmatprep.mubr.bf16.mxu0 %v379
    %1348 = vmatmul.mubr.bf16.gmra.mrb[0].mxu0 %v378
    %v1349 = vpop.f32.mrb[0].mxu0
    %v1350 = vadd.f32 %v1314, %v1349
    %v1351 = vpop.f32.mrb[0].mxu0
    %v1352 = vpop.f32.mrb[0].mxu0
    %v1353 = vadd.f32 %v1314, %v1352
    %v1354 = vpop.f32.mrb[0].mxu0
    %1355 = vdwg.mxu0
    %s1356 = scalar_lea.vmem [#allocation11], 48
    %1357 = vst.msk [vmem:[%s1356] sm:$0xff] %vm423, %v1350
    %1358 = vst.msk [vmem:[%s1356 + $0x8] sm:$0xff] %vm423, %v1353
    %v1359 = vshra.s32 %v88, 8
    %v1360 = vshra.s32 %v89, 8
    %v1361 = vshra.s32 %v90, 8
    %v1362 = vshra.s32 %v91, 8
    %v1363 = vshra.s32 %v92, 8
    %v1364 = vshra.s32 %v93, 8
    %v1365 = vshra.s32 %v94, 8
    %v1366 = vshra.s32 %v95, 8
    %v1367 = vshra.s32 %v96, 8
    %v1368 = vshra.s32 %v97, 8
    %v1369 = vshra.s32 %v98, 8
    %v1370 = vshra.s32 %v99, 8
    %v1371 = vshra.s32 %v100, 8
    %v1372 = vshra.s32 %v101, 8
    %v1373 = vshra.s32 %v102, 8
    %v1374 = vshra.s32 %v103, 8
    %v1375 = vshra.s32 %v104, 8
    %v1376 = vshra.s32 %v105, 8
    %v1377 = vshra.s32 %v106, 8
    %v1378 = vshra.s32 %v107, 8
    %v1379 = vshra.s32 %v108, 8
    %v1380 = vshra.s32 %v109, 8
    %v1381 = vshra.s32 %v110, 8
    %v1382 = vshra.s32 %v111, 8
    %v1383 = vshra.s32 %v112, 8
    %v1384 = vshra.s32 %v113, 8
    %v1385 = vshra.s32 %v114, 8
    %v1386 = vshra.s32 %v115, 8
    %v1387 = vshra.s32 %v116, 8
    %v1388 = vshra.s32 %v117, 8
    %v1389 = vshra.s32 %v118, 8
    %v1390 = vshra.s32 %v119, 8
    %v1391 = vand.u32 %v1359, 15
    %v1392 = vand.u32 %v1360, 15
    %v1393 = vand.u32 %v1361, 15
    %v1394 = vand.u32 %v1362, 15
    %v1395 = vand.u32 %v1363, 15
    %v1396 = vand.u32 %v1364, 15
    %v1397 = vand.u32 %v1365, 15
    %v1398 = vand.u32 %v1366, 15
    %v1399 = vand.u32 %v1367, 15
    %v1400 = vand.u32 %v1368, 15
    %v1401 = vand.u32 %v1369, 15
    %v1402 = vand.u32 %v1370, 15
    %v1403 = vand.u32 %v1371, 15
    %v1404 = vand.u32 %v1372, 15
    %v1405 = vand.u32 %v1373, 15
    %v1406 = vand.u32 %v1374, 15
    %v1407 = vand.u32 %v1375, 15
    %v1408 = vand.u32 %v1376, 15
    %v1409 = vand.u32 %v1377, 15
    %v1410 = vand.u32 %v1378, 15
    %v1411 = vand.u32 %v1379, 15
    %v1412 = vand.u32 %v1380, 15
    %v1413 = vand.u32 %v1381, 15
    %v1414 = vand.u32 %v1382, 15
    %v1415 = vand.u32 %v1383, 15
    %v1416 = vand.u32 %v1384, 15
    %v1417 = vand.u32 %v1385, 15
    %v1418 = vand.u32 %v1386, 15
    %v1419 = vand.u32 %v1387, 15
    %v1420 = vand.u32 %v1388, 15
    %v1421 = vand.u32 %v1389, 15
    %v1422 = vand.u32 %v1390, 15
    %v1423 = vshra.s32 %v120, 8
    %v1424 = vand.u32 %v1423, 15
    %v1426 = vunpack.c.l.s4 1966171168
    %v1427 = vunpack.c.0.s8 %v1426
    %v1428 = vlaneseq
    %v1429 = vshrl.u32 %v1428, 7
    %v1430 = vsub.s32 %v1427, %v1429
    %v1431 = vrot.slane %v1424, %v1430
    %v1432 = vcombine.high %v1431, %v1431
    %v1434 = vunpack.c.l.s4 1966171168
    %v1435 = vunpack.c.0.s8 %v1434
    %v1436 = vlaneseq
    %v1437 = vshrl.u32 %v1436, 7
    %v1438 = vsub.s32 %v1435, %v1437
    %v1439 = vrot.slane %v1431, %v1438
    %v1441 = vunpack.c.l.s4 1966171168
    %v1442 = vunpack.c.0.s8 %v1441
    %v1443 = vlaneseq
    %v1444 = vshrl.u32 %v1443, 7
    %v1445 = vsub.s32 %v1442, %v1444
    %v1446 = vrot.slane %v1432, %v1445
    %v1447 = vcombine.high %v1439, %v1439
    %v1448 = vcombine.high %v1446, %v1446
    %v1449 = vlaneseq
    %v1450 = vshrl.u32 %v1449, 7
    %v1451 = vsub.s32 0, %v1450
    %v1452 = vrot.slane %v1439, %v1451
    %v1453 = vlaneseq
    %v1454 = vshrl.u32 %v1453, 7
    %v1455 = vsub.s32 0, %v1454
    %v1456 = vrot.slane %v1446, %v1455
    %v1457 = vlaneseq
    %v1458 = vshrl.u32 %v1457, 7
    %v1459 = vsub.s32 0, %v1458
    %v1460 = vrot.slane %v1447, %v1459
    %v1461 = vlaneseq
    %v1462 = vshrl.u32 %v1461, 7
    %v1463 = vsub.s32 0, %v1462
    %v1464 = vrot.slane %v1448, %v1463
    %v1465 = vsub.s32 %v1391, %v1452
    %v1466 = vsub.s32 %v1392, %v1452
    %v1467 = vsub.s32 %v1393, %v1452
    %v1468 = vsub.s32 %v1394, %v1452
    %v1469 = vsub.s32 %v1395, %v1452
    %v1470 = vsub.s32 %v1396, %v1452
    %v1471 = vsub.s32 %v1397, %v1452
    %v1472 = vsub.s32 %v1398, %v1452
    %v1473 = vsub.s32 %v1399, %v1456
    %v1474 = vsub.s32 %v1400, %v1456
    %v1475 = vsub.s32 %v1401, %v1456
    %v1476 = vsub.s32 %v1402, %v1456
    %v1477 = vsub.s32 %v1403, %v1456
    %v1478 = vsub.s32 %v1404, %v1456
    %v1479 = vsub.s32 %v1405, %v1456
    %v1480 = vsub.s32 %v1406, %v1456
    %v1481 = vsub.s32 %v1407, %v1460
    %v1482 = vsub.s32 %v1408, %v1460
    %v1483 = vsub.s32 %v1409, %v1460
    %v1484 = vsub.s32 %v1410, %v1460
    %v1485 = vsub.s32 %v1411, %v1460
    %v1486 = vsub.s32 %v1412, %v1460
    %v1487 = vsub.s32 %v1413, %v1460
    %v1488 = vsub.s32 %v1414, %v1460
    %v1489 = vsub.s32 %v1415, %v1464
    %v1490 = vsub.s32 %v1416, %v1464
    %v1491 = vsub.s32 %v1417, %v1464
    %v1492 = vsub.s32 %v1418, %v1464
    %v1493 = vsub.s32 %v1419, %v1464
    %v1494 = vsub.s32 %v1420, %v1464
    %v1495 = vsub.s32 %v1421, %v1464
    %v1496 = vsub.s32 %v1422, %v1464
    %v1497 = vcvt.s32.f32 %v1465
    %v1498 = vcvt.s32.f32 %v1466
    %v1499 = vcvt.s32.f32 %v1467
    %v1500 = vcvt.s32.f32 %v1468
    %v1501 = vcvt.s32.f32 %v1469
    %v1502 = vcvt.s32.f32 %v1470
    %v1503 = vcvt.s32.f32 %v1471
    %v1504 = vcvt.s32.f32 %v1472
    %v1505 = vcvt.s32.f32 %v1473
    %v1506 = vcvt.s32.f32 %v1474
    %v1507 = vcvt.s32.f32 %v1475
    %v1508 = vcvt.s32.f32 %v1476
    %v1509 = vcvt.s32.f32 %v1477
    %v1510 = vcvt.s32.f32 %v1478
    %v1511 = vcvt.s32.f32 %v1479
    %v1512 = vcvt.s32.f32 %v1480
    %v1513 = vcvt.s32.f32 %v1481
    %v1514 = vcvt.s32.f32 %v1482
    %v1515 = vcvt.s32.f32 %v1483
    %v1516 = vcvt.s32.f32 %v1484
    %v1517 = vcvt.s32.f32 %v1485
    %v1518 = vcvt.s32.f32 %v1486
    %v1519 = vcvt.s32.f32 %v1487
    %v1520 = vcvt.s32.f32 %v1488
    %v1521 = vcvt.s32.f32 %v1489
    %v1522 = vcvt.s32.f32 %v1490
    %v1523 = vcvt.s32.f32 %v1491
    %v1524 = vcvt.s32.f32 %v1492
    %v1525 = vcvt.s32.f32 %v1493
    %v1526 = vcvt.s32.f32 %v1494
    %v1527 = vcvt.s32.f32 %v1495
    %v1528 = vcvt.s32.f32 %v1496
    %v1531 = vunpack.c.l.s4 1966171168
    %v1532 = vunpack.c.0.s8 %v1531
    %v1533 = vlaneseq
    %v1534 = vshrl.u32 %v1533, 7
    %v1535 = vsub.s32 %v1532, %v1534
    %v1536 = vrot.slane %v133, %v1535
    %v1537 = vcombine.high %v1536, %v1536
    %v1539 = vunpack.c.l.s4 1966171168
    %v1540 = vunpack.c.0.s8 %v1539
    %v1541 = vlaneseq
    %v1542 = vshrl.u32 %v1541, 7
    %v1543 = vsub.s32 %v1540, %v1542
    %v1544 = vrot.slane %v1536, %v1543
    %v1546 = vunpack.c.l.s4 1966171168
    %v1547 = vunpack.c.0.s8 %v1546
    %v1548 = vlaneseq
    %v1549 = vshrl.u32 %v1548, 7
    %v1550 = vsub.s32 %v1547, %v1549
    %v1551 = vrot.slane %v1537, %v1550
    %v1552 = vcombine.high %v1544, %v1544
    %v1553 = vcombine.high %v1551, %v1551
    %v1554 = vlaneseq
    %v1555 = vshrl.u32 %v1554, 7
    %v1556 = vsub.s32 0, %v1555
    %v1557 = vrot.slane %v1544, %v1556
    %v1558 = vlaneseq
    %v1559 = vshrl.u32 %v1558, 7
    %v1560 = vsub.s32 0, %v1559
    %v1561 = vrot.slane %v1551, %v1560
    %v1562 = vlaneseq
    %v1563 = vshrl.u32 %v1562, 7
    %v1564 = vsub.s32 0, %v1563
    %v1565 = vrot.slane %v1552, %v1564
    %v1566 = vlaneseq
    %v1567 = vshrl.u32 %v1566, 7
    %v1568 = vsub.s32 0, %v1567
    %v1569 = vrot.slane %v1553, %v1568
    %v1574 = vmul.f32 %v1497, %v1557
    %v1575 = vmul.f32 %v1498, %v1557
    %v1576 = vmul.f32 %v1499, %v1557
    %v1577 = vmul.f32 %v1500, %v1557
    %v1578 = vmul.f32 %v1501, %v1557
    %v1579 = vmul.f32 %v1502, %v1557
    %v1580 = vmul.f32 %v1503, %v1557
    %v1581 = vmul.f32 %v1504, %v1557
    %v1582 = vmul.f32 %v1505, %v1561
    %v1583 = vmul.f32 %v1506, %v1561
    %v1584 = vmul.f32 %v1507, %v1561
    %v1585 = vmul.f32 %v1508, %v1561
    %v1586 = vmul.f32 %v1509, %v1561
    %v1587 = vmul.f32 %v1510, %v1561
    %v1588 = vmul.f32 %v1511, %v1561
    %v1589 = vmul.f32 %v1512, %v1561
    %v1590 = vmul.f32 %v1513, %v1565
    %v1591 = vmul.f32 %v1514, %v1565
    %v1592 = vmul.f32 %v1515, %v1565
    %v1593 = vmul.f32 %v1516, %v1565
    %v1594 = vmul.f32 %v1517, %v1565
    %v1595 = vmul.f32 %v1518, %v1565
    %v1596 = vmul.f32 %v1519, %v1565
    %v1597 = vmul.f32 %v1520, %v1565
    %v1598 = vmul.f32 %v1521, %v1569
    %v1599 = vmul.f32 %v1522, %v1569
    %v1600 = vmul.f32 %v1523, %v1569
    %v1601 = vmul.f32 %v1524, %v1569
    %v1602 = vmul.f32 %v1525, %v1569
    %v1603 = vmul.f32 %v1526, %v1569
    %v1604 = vmul.f32 %v1527, %v1569
    %v1605 = vmul.f32 %v1528, %v1569
    %v1606 = vpack.c.bf16 %v1575, %v1574
    %v1607 = vpack.c.bf16 %v1577, %v1576
    %v1608 = vpack.c.bf16 %v1579, %v1578
    %v1609 = vpack.c.bf16 %v1581, %v1580
    %v1610 = vpack.c.bf16 %v1583, %v1582
    %v1611 = vpack.c.bf16 %v1585, %v1584
    %v1612 = vpack.c.bf16 %v1587, %v1586
    %v1613 = vpack.c.bf16 %v1589, %v1588
    %v1614 = vpack.c.bf16 %v1591, %v1590
    %v1615 = vpack.c.bf16 %v1593, %v1592
    %v1616 = vpack.c.bf16 %v1595, %v1594
    %v1617 = vpack.c.bf16 %v1597, %v1596
    %v1618 = vpack.c.bf16 %v1599, %v1598
    %v1619 = vpack.c.bf16 %v1601, %v1600
    %v1620 = vpack.c.bf16 %v1603, %v1602
    %v1621 = vpack.c.bf16 %v1605, %v1604
    %v1622 = vlaneseq
    %v1623 = vshrl.u32 %v1622, 7
    %v1624 = vsub.s32 4, %v1623
    %v1625 = vrot.slane %v137, %v1624
    %1626 = vmatprep.subr.bf16.mxu0 0
    %1627 = vmatpush1.bf16.msra.mxu0 %v1606
    %1628 = vmatprep.subr.bf16.mxu0 0
    %1629 = vmatpush1.bf16.msra.mxu0 %v1607
    %1630 = vmatprep.subr.bf16.mxu0 0
    %1631 = vmatpush1.bf16.msra.mxu0 %v1608
    %1632 = vmatprep.subr.bf16.mxu0 0
    %1633 = vmatpush1.bf16.msra.mxu0 %v1609
    %1634 = vmatprep.subr.bf16.mxu0 0
    %1635 = vmatpush1.bf16.msra.mxu0 %v1610
    %1636 = vmatprep.subr.bf16.mxu0 0
    %1637 = vmatpush1.bf16.msra.mxu0 %v1611
    %1638 = vmatprep.subr.bf16.mxu0 0
    %1639 = vmatpush1.bf16.msra.mxu0 %v1612
    %1640 = vmatprep.subr.bf16.mxu0 0
    %1641 = vmatpush1.bf16.msra.mxu0 %v1613
    %1642 = vmatprep.subr.bf16.mxu0 0
    %1643 = vmatpush1.bf16.msra.mxu0 %v1614
    %1644 = vmatprep.subr.bf16.mxu0 0
    %1645 = vmatpush1.bf16.msra.mxu0 %v1615
    %1646 = vmatprep.subr.bf16.mxu0 0
    %1647 = vmatpush1.bf16.msra.mxu0 %v1616
    %1648 = vmatprep.subr.bf16.mxu0 0
    %1649 = vmatpush1.bf16.msra.mxu0 %v1617
    %1650 = vmatprep.subr.bf16.mxu0 0
    %1651 = vmatpush1.bf16.msra.mxu0 %v1618
    %1652 = vmatprep.subr.bf16.mxu0 0
    %1653 = vmatpush1.bf16.msra.mxu0 %v1619
    %1654 = vmatprep.subr.bf16.mxu0 0
    %1655 = vmatpush1.bf16.msra.mxu0 %v1620
    %1656 = vmatprep.subr.bf16.mxu0 0
    %1657 = vmatpush1.bf16.msra.mxu0 %v1621
    %1658 = vmatprep.mubr.bf16.mxu0 %v379
    %1659 = vmatmul.mubr.bf16.gmra.mrb[0].mxu0 %v378
    %v1660 = vpop.f32.mrb[0].mxu0
    %v1661 = vadd.f32 %v1625, %v1660
    %v1662 = vpop.f32.mrb[0].mxu0
    %v1663 = vpop.f32.mrb[0].mxu0
    %v1664 = vadd.f32 %v1625, %v1663
    %v1665 = vpop.f32.mrb[0].mxu0
    %1666 = vdwg.mxu0
    %s1667 = scalar_lea.vmem [#allocation11], 64
    %1668 = vst.msk [vmem:[%s1667] sm:$0xff] %vm423, %v1661
    %1669 = vst.msk [vmem:[%s1667 + $0x8] sm:$0xff] %vm423, %v1664
    %v1670 = vshra.s32 %v88, 24
    %v1671 = vshra.s32 %v89, 24
    %v1672 = vshra.s32 %v90, 24
    %v1673 = vshra.s32 %v91, 24
    %v1674 = vshra.s32 %v92, 24
    %v1675 = vshra.s32 %v93, 24
    %v1676 = vshra.s32 %v94, 24
    %v1677 = vshra.s32 %v95, 24
    %v1678 = vshra.s32 %v96, 24
    %v1679 = vshra.s32 %v97, 24
    %v1680 = vshra.s32 %v98, 24
    %v1681 = vshra.s32 %v99, 24
    %v1682 = vshra.s32 %v100, 24
    %v1683 = vshra.s32 %v101, 24
    %v1684 = vshra.s32 %v102, 24
    %v1685 = vshra.s32 %v103, 24
    %v1686 = vshra.s32 %v104, 24
    %v1687 = vshra.s32 %v105, 24
    %v1688 = vshra.s32 %v106, 24
    %v1689 = vshra.s32 %v107, 24
    %v1690 = vshra.s32 %v108, 24
    %v1691 = vshra.s32 %v109, 24
    %v1692 = vshra.s32 %v110, 24
    %v1693 = vshra.s32 %v111, 24
    %v1694 = vshra.s32 %v112, 24
    %v1695 = vshra.s32 %v113, 24
    %v1696 = vshra.s32 %v114, 24
    %v1697 = vshra.s32 %v115, 24
    %v1698 = vshra.s32 %v116, 24
    %v1699 = vshra.s32 %v117, 24
    %v1700 = vshra.s32 %v118, 24
    %v1701 = vshra.s32 %v119, 24
    %v1702 = vand.u32 %v1670, 15
    %v1703 = vand.u32 %v1671, 15
    %v1704 = vand.u32 %v1672, 15
    %v1705 = vand.u32 %v1673, 15
    %v1706 = vand.u32 %v1674, 15
    %v1707 = vand.u32 %v1675, 15
    %v1708 = vand.u32 %v1676, 15
    %v1709 = vand.u32 %v1677, 15
    %v1710 = vand.u32 %v1678, 15
    %v1711 = vand.u32 %v1679, 15
    %v1712 = vand.u32 %v1680, 15
    %v1713 = vand.u32 %v1681, 15
    %v1714 = vand.u32 %v1682, 15
    %v1715 = vand.u32 %v1683, 15
    %v1716 = vand.u32 %v1684, 15
    %v1717 = vand.u32 %v1685, 15
    %v1718 = vand.u32 %v1686, 15
    %v1719 = vand.u32 %v1687, 15
    %v1720 = vand.u32 %v1688, 15
    %v1721 = vand.u32 %v1689, 15
    %v1722 = vand.u32 %v1690, 15
    %v1723 = vand.u32 %v1691, 15
    %v1724 = vand.u32 %v1692, 15
    %v1725 = vand.u32 %v1693, 15
    %v1726 = vand.u32 %v1694, 15
    %v1727 = vand.u32 %v1695, 15
    %v1728 = vand.u32 %v1696, 15
    %v1729 = vand.u32 %v1697, 15
    %v1730 = vand.u32 %v1698, 15
    %v1731 = vand.u32 %v1699, 15
    %v1732 = vand.u32 %v1700, 15
    %v1733 = vand.u32 %v1701, 15
    %v1734 = vshra.s32 %v120, 24
    %v1735 = vand.u32 %v1734, 15
    %v1737 = vunpack.c.l.s4 1966171168
    %v1738 = vunpack.c.0.s8 %v1737
    %v1739 = vlaneseq
    %v1740 = vshrl.u32 %v1739, 7
    %v1741 = vsub.s32 %v1738, %v1740
    %v1742 = vrot.slane %v1735, %v1741
    %v1743 = vcombine.high %v1742, %v1742
    %v1745 = vunpack.c.l.s4 1966171168
    %v1746 = vunpack.c.0.s8 %v1745
    %v1747 = vlaneseq
    %v1748 = vshrl.u32 %v1747, 7
    %v1749 = vsub.s32 %v1746, %v1748
    %v1750 = vrot.slane %v1742, %v1749
    %v1752 = vunpack.c.l.s4 1966171168
    %v1753 = vunpack.c.0.s8 %v1752
    %v1754 = vlaneseq
    %v1755 = vshrl.u32 %v1754, 7
    %v1756 = vsub.s32 %v1753, %v1755
    %v1757 = vrot.slane %v1743, %v1756
    %v1758 = vcombine.high %v1750, %v1750
    %v1759 = vcombine.high %v1757, %v1757
    %v1760 = vlaneseq
    %v1761 = vshrl.u32 %v1760, 7
    %v1762 = vsub.s32 0, %v1761
    %v1763 = vrot.slane %v1750, %v1762
    %v1764 = vlaneseq
    %v1765 = vshrl.u32 %v1764, 7
    %v1766 = vsub.s32 0, %v1765
    %v1767 = vrot.slane %v1757, %v1766
    %v1768 = vlaneseq
    %v1769 = vshrl.u32 %v1768, 7
    %v1770 = vsub.s32 0, %v1769
    %v1771 = vrot.slane %v1758, %v1770
    %v1772 = vlaneseq
    %v1773 = vshrl.u32 %v1772, 7
    %v1774 = vsub.s32 0, %v1773
    %v1775 = vrot.slane %v1759, %v1774
    %v1776 = vsub.s32 %v1702, %v1763
    %v1777 = vsub.s32 %v1703, %v1763
    %v1778 = vsub.s32 %v1704, %v1763
    %v1779 = vsub.s32 %v1705, %v1763
    %v1780 = vsub.s32 %v1706, %v1763
    %v1781 = vsub.s32 %v1707, %v1763
    %v1782 = vsub.s32 %v1708, %v1763
    %v1783 = vsub.s32 %v1709, %v1763
    %v1784 = vsub.s32 %v1710, %v1767
    %v1785 = vsub.s32 %v1711, %v1767
    %v1786 = vsub.s32 %v1712, %v1767
    %v1787 = vsub.s32 %v1713, %v1767
    %v1788 = vsub.s32 %v1714, %v1767
    %v1789 = vsub.s32 %v1715, %v1767
    %v1790 = vsub.s32 %v1716, %v1767
    %v1791 = vsub.s32 %v1717, %v1767
    %v1792 = vsub.s32 %v1718, %v1771
    %v1793 = vsub.s32 %v1719, %v1771
    %v1794 = vsub.s32 %v1720, %v1771
    %v1795 = vsub.s32 %v1721, %v1771
    %v1796 = vsub.s32 %v1722, %v1771
    %v1797 = vsub.s32 %v1723, %v1771
    %v1798 = vsub.s32 %v1724, %v1771
    %v1799 = vsub.s32 %v1725, %v1771
    %v1800 = vsub.s32 %v1726, %v1775
    %v1801 = vsub.s32 %v1727, %v1775
    %v1802 = vsub.s32 %v1728, %v1775
    %v1803 = vsub.s32 %v1729, %v1775
    %v1804 = vsub.s32 %v1730, %v1775
    %v1805 = vsub.s32 %v1731, %v1775
    %v1806 = vsub.s32 %v1732, %v1775
    %v1807 = vsub.s32 %v1733, %v1775
    %v1808 = vcvt.s32.f32 %v1776
    %v1809 = vcvt.s32.f32 %v1777
    %v1810 = vcvt.s32.f32 %v1778
    %v1811 = vcvt.s32.f32 %v1779
    %v1812 = vcvt.s32.f32 %v1780
    %v1813 = vcvt.s32.f32 %v1781
    %v1814 = vcvt.s32.f32 %v1782
    %v1815 = vcvt.s32.f32 %v1783
    %v1816 = vcvt.s32.f32 %v1784
    %v1817 = vcvt.s32.f32 %v1785
    %v1818 = vcvt.s32.f32 %v1786
    %v1819 = vcvt.s32.f32 %v1787
    %v1820 = vcvt.s32.f32 %v1788
    %v1821 = vcvt.s32.f32 %v1789
    %v1822 = vcvt.s32.f32 %v1790
    %v1823 = vcvt.s32.f32 %v1791
    %v1824 = vcvt.s32.f32 %v1792
    %v1825 = vcvt.s32.f32 %v1793
    %v1826 = vcvt.s32.f32 %v1794
    %v1827 = vcvt.s32.f32 %v1795
    %v1828 = vcvt.s32.f32 %v1796
    %v1829 = vcvt.s32.f32 %v1797
    %v1830 = vcvt.s32.f32 %v1798
    %v1831 = vcvt.s32.f32 %v1799
    %v1832 = vcvt.s32.f32 %v1800
    %v1833 = vcvt.s32.f32 %v1801
    %v1834 = vcvt.s32.f32 %v1802
    %v1835 = vcvt.s32.f32 %v1803
    %v1836 = vcvt.s32.f32 %v1804
    %v1837 = vcvt.s32.f32 %v1805
    %v1838 = vcvt.s32.f32 %v1806
    %v1839 = vcvt.s32.f32 %v1807
    %v1842 = vunpack.c.l.s4 1966171168
    %v1843 = vunpack.c.0.s8 %v1842
    %v1844 = vlaneseq
    %v1845 = vshrl.u32 %v1844, 7
    %v1846 = vsub.s32 %v1843, %v1845
    %v1847 = vrot.slane %v134, %v1846
    %v1848 = vcombine.high %v1847, %v1847
    %v1850 = vunpack.c.l.s4 1966171168
    %v1851 = vunpack.c.0.s8 %v1850
    %v1852 = vlaneseq
    %v1853 = vshrl.u32 %v1852, 7
    %v1854 = vsub.s32 %v1851, %v1853
    %v1855 = vrot.slane %v1847, %v1854
    %v1857 = vunpack.c.l.s4 1966171168
    %v1858 = vunpack.c.0.s8 %v1857
    %v1859 = vlaneseq
    %v1860 = vshrl.u32 %v1859, 7
    %v1861 = vsub.s32 %v1858, %v1860
    %v1862 = vrot.slane %v1848, %v1861
    %v1863 = vcombine.high %v1855, %v1855
    %v1864 = vcombine.high %v1862, %v1862
    %v1865 = vlaneseq
    %v1866 = vshrl.u32 %v1865, 7
    %v1867 = vsub.s32 0, %v1866
    %v1868 = vrot.slane %v1855, %v1867
    %v1869 = vlaneseq
    %v1870 = vshrl.u32 %v1869, 7
    %v1871 = vsub.s32 0, %v1870
    %v1872 = vrot.slane %v1862, %v1871
    %v1873 = vlaneseq
    %v1874 = vshrl.u32 %v1873, 7
    %v1875 = vsub.s32 0, %v1874
    %v1876 = vrot.slane %v1863, %v1875
    %v1877 = vlaneseq
    %v1878 = vshrl.u32 %v1877, 7
    %v1879 = vsub.s32 0, %v1878
    %v1880 = vrot.slane %v1864, %v1879
    %v1885 = vmul.f32 %v1808, %v1868
    %v1886 = vmul.f32 %v1809, %v1868
    %v1887 = vmul.f32 %v1810, %v1868
    %v1888 = vmul.f32 %v1811, %v1868
    %v1889 = vmul.f32 %v1812, %v1868
    %v1890 = vmul.f32 %v1813, %v1868
    %v1891 = vmul.f32 %v1814, %v1868
    %v1892 = vmul.f32 %v1815, %v1868
    %v1893 = vmul.f32 %v1816, %v1872
    %v1894 = vmul.f32 %v1817, %v1872
    %v1895 = vmul.f32 %v1818, %v1872
    %v1896 = vmul.f32 %v1819, %v1872
    %v1897 = vmul.f32 %v1820, %v1872
    %v1898 = vmul.f32 %v1821, %v1872
    %v1899 = vmul.f32 %v1822, %v1872
    %v1900 = vmul.f32 %v1823, %v1872
    %v1901 = vmul.f32 %v1824, %v1876
    %v1902 = vmul.f32 %v1825, %v1876
    %v1903 = vmul.f32 %v1826, %v1876
    %v1904 = vmul.f32 %v1827, %v1876
    %v1905 = vmul.f32 %v1828, %v1876
    %v1906 = vmul.f32 %v1829, %v1876
    %v1907 = vmul.f32 %v1830, %v1876
    %v1908 = vmul.f32 %v1831, %v1876
    %v1909 = vmul.f32 %v1832, %v1880
    %v1910 = vmul.f32 %v1833, %v1880
    %v1911 = vmul.f32 %v1834, %v1880
    %v1912 = vmul.f32 %v1835, %v1880
    %v1913 = vmul.f32 %v1836, %v1880
    %v1914 = vmul.f32 %v1837, %v1880
    %v1915 = vmul.f32 %v1838, %v1880
    %v1916 = vmul.f32 %v1839, %v1880
    %v1917 = vpack.c.bf16 %v1886, %v1885
    %v1918 = vpack.c.bf16 %v1888, %v1887
    %v1919 = vpack.c.bf16 %v1890, %v1889
    %v1920 = vpack.c.bf16 %v1892, %v1891
    %v1921 = vpack.c.bf16 %v1894, %v1893
    %v1922 = vpack.c.bf16 %v1896, %v1895
    %v1923 = vpack.c.bf16 %v1898, %v1897
    %v1924 = vpack.c.bf16 %v1900, %v1899
    %v1925 = vpack.c.bf16 %v1902, %v1901
    %v1926 = vpack.c.bf16 %v1904, %v1903
    %v1927 = vpack.c.bf16 %v1906, %v1905
    %v1928 = vpack.c.bf16 %v1908, %v1907
    %v1929 = vpack.c.bf16 %v1910, %v1909
    %v1930 = vpack.c.bf16 %v1912, %v1911
    %v1931 = vpack.c.bf16 %v1914, %v1913
    %v1932 = vpack.c.bf16 %v1916, %v1915
    %v1933 = vlaneseq
    %v1934 = vshrl.u32 %v1933, 7
    %v1935 = vsub.s32 5, %v1934
    %v1936 = vrot.slane %v137, %v1935
    %1937 = vmatprep.subr.bf16.mxu0 0
    %1938 = vmatpush1.bf16.msra.mxu0 %v1917
    %1939 = vmatprep.subr.bf16.mxu0 0
    %1940 = vmatpush1.bf16.msra.mxu0 %v1918
    %1941 = vmatprep.subr.bf16.mxu0 0
    %1942 = vmatpush1.bf16.msra.mxu0 %v1919
    %1943 = vmatprep.subr.bf16.mxu0 0
    %1944 = vmatpush1.bf16.msra.mxu0 %v1920
    %1945 = vmatprep.subr.bf16.mxu0 0
    %1946 = vmatpush1.bf16.msra.mxu0 %v1921
    %1947 = vmatprep.subr.bf16.mxu0 0
    %1948 = vmatpush1.bf16.msra.mxu0 %v1922
    %1949 = vmatprep.subr.bf16.mxu0 0
    %1950 = vmatpush1.bf16.msra.mxu0 %v1923
    %1951 = vmatprep.subr.bf16.mxu0 0
    %1952 = vmatpush1.bf16.msra.mxu0 %v1924
    %1953 = vmatprep.subr.bf16.mxu0 0
    %1954 = vmatpush1.bf16.msra.mxu0 %v1925
    %1955 = vmatprep.subr.bf16.mxu0 0
    %1956 = vmatpush1.bf16.msra.mxu0 %v1926
    %1957 = vmatprep.subr.bf16.mxu0 0
    %1958 = vmatpush1.bf16.msra.mxu0 %v1927
    %1959 = vmatprep.subr.bf16.mxu0 0
    %1960 = vmatpush1.bf16.msra.mxu0 %v1928
    %1961 = vmatprep.subr.bf16.mxu0 0
    %1962 = vmatpush1.bf16.msra.mxu0 %v1929
    %1963 = vmatprep.subr.bf16.mxu0 0
    %1964 = vmatpush1.bf16.msra.mxu0 %v1930
    %1965 = vmatprep.subr.bf16.mxu0 0
    %1966 = vmatpush1.bf16.msra.mxu0 %v1931
    %1967 = vmatprep.subr.bf16.mxu0 0
    %1968 = vmatpush1.bf16.msra.mxu0 %v1932
    %1969 = vmatprep.mubr.bf16.mxu0 %v379
    %1970 = vmatmul.mubr.bf16.gmra.mrb[0].mxu0 %v378
    %v1971 = vpop.f32.mrb[0].mxu0
    %v1972 = vadd.f32 %v1936, %v1971
    %v1973 = vpop.f32.mrb[0].mxu0
    %v1974 = vpop.f32.mrb[0].mxu0
    %v1975 = vadd.f32 %v1936, %v1974
    %v1976 = vpop.f32.mrb[0].mxu0
    %1977 = vdwg.mxu0
    %s1978 = scalar_lea.vmem [#allocation11], 80
    %1979 = vst.msk [vmem:[%s1978] sm:$0xff] %vm423, %v1972
    %1980 = vst.msk [vmem:[%s1978 + $0x8] sm:$0xff] %vm423, %v1975
    %v1981 = vshra.s32 %v88, 12
    %v1982 = vshra.s32 %v89, 12
    %v1983 = vshra.s32 %v90, 12
    %v1984 = vshra.s32 %v91, 12
    %v1985 = vshra.s32 %v92, 12
    %v1986 = vshra.s32 %v93, 12
    %v1987 = vshra.s32 %v94, 12
    %v1988 = vshra.s32 %v95, 12
    %v1989 = vshra.s32 %v96, 12
    %v1990 = vshra.s32 %v97, 12
    %v1991 = vshra.s32 %v98, 12
    %v1992 = vshra.s32 %v99, 12
    %v1993 = vshra.s32 %v100, 12
    %v1994 = vshra.s32 %v101, 12
    %v1995 = vshra.s32 %v102, 12
    %v1996 = vshra.s32 %v103, 12
    %v1997 = vshra.s32 %v104, 12
    %v1998 = vshra.s32 %v105, 12
    %v1999 = vshra.s32 %v106, 12
    %v2000 = vshra.s32 %v107, 12
    %v2001 = vshra.s32 %v108, 12
    %v2002 = vshra.s32 %v109, 12
    %v2003 = vshra.s32 %v110, 12
    %v2004 = vshra.s32 %v111, 12
    %v2005 = vshra.s32 %v112, 12
    %v2006 = vshra.s32 %v113, 12
    %v2007 = vshra.s32 %v114, 12
    %v2008 = vshra.s32 %v115, 12
    %v2009 = vshra.s32 %v116, 12
    %v2010 = vshra.s32 %v117, 12
    %v2011 = vshra.s32 %v118, 12
    %v2012 = vshra.s32 %v119, 12
    %v2013 = vand.u32 %v1981, 15
    %v2014 = vand.u32 %v1982, 15
    %v2015 = vand.u32 %v1983, 15
    %v2016 = vand.u32 %v1984, 15
    %v2017 = vand.u32 %v1985, 15
    %v2018 = vand.u32 %v1986, 15
    %v2019 = vand.u32 %v1987, 15
    %v2020 = vand.u32 %v1988, 15
    %v2021 = vand.u32 %v1989, 15
    %v2022 = vand.u32 %v1990, 15
    %v2023 = vand.u32 %v1991, 15
    %v2024 = vand.u32 %v1992, 15
    %v2025 = vand.u32 %v1993, 15
    %v2026 = vand.u32 %v1994, 15
    %v2027 = vand.u32 %v1995, 15
    %v2028 = vand.u32 %v1996, 15
    %v2029 = vand.u32 %v1997, 15
    %v2030 = vand.u32 %v1998, 15
    %v2031 = vand.u32 %v1999, 15
    %v2032 = vand.u32 %v2000, 15
    %v2033 = vand.u32 %v2001, 15
    %v2034 = vand.u32 %v2002, 15
    %v2035 = vand.u32 %v2003, 15
    %v2036 = vand.u32 %v2004, 15
    %v2037 = vand.u32 %v2005, 15
    %v2038 = vand.u32 %v2006, 15
    %v2039 = vand.u32 %v2007, 15
    %v2040 = vand.u32 %v2008, 15
    %v2041 = vand.u32 %v2009, 15
    %v2042 = vand.u32 %v2010, 15
    %v2043 = vand.u32 %v2011, 15
    %v2044 = vand.u32 %v2012, 15
    %v2045 = vshra.s32 %v120, 12
    %v2046 = vand.u32 %v2045, 15
    %v2048 = vunpack.c.l.s4 1966171168
    %v2049 = vunpack.c.0.s8 %v2048
    %v2050 = vlaneseq
    %v2051 = vshrl.u32 %v2050, 7
    %v2052 = vsub.s32 %v2049, %v2051
    %v2053 = vrot.slane %v2046, %v2052
    %v2054 = vcombine.high %v2053, %v2053
    %v2056 = vunpack.c.l.s4 1966171168
    %v2057 = vunpack.c.0.s8 %v2056
    %v2058 = vlaneseq
    %v2059 = vshrl.u32 %v2058, 7
    %v2060 = vsub.s32 %v2057, %v2059
    %v2061 = vrot.slane %v2053, %v2060
    %v2063 = vunpack.c.l.s4 1966171168
    %v2064 = vunpack.c.0.s8 %v2063
    %v2065 = vlaneseq
    %v2066 = vshrl.u32 %v2065, 7
    %v2067 = vsub.s32 %v2064, %v2066
    %v2068 = vrot.slane %v2054, %v2067
    %v2069 = vcombine.high %v2061, %v2061
    %v2070 = vcombine.high %v2068, %v2068
    %v2071 = vlaneseq
    %v2072 = vshrl.u32 %v2071, 7
    %v2073 = vsub.s32 0, %v2072
    %v2074 = vrot.slane %v2061, %v2073
    %v2075 = vlaneseq
    %v2076 = vshrl.u32 %v2075, 7
    %v2077 = vsub.s32 0, %v2076
    %v2078 = vrot.slane %v2068, %v2077
    %v2079 = vlaneseq
    %v2080 = vshrl.u32 %v2079, 7
    %v2081 = vsub.s32 0, %v2080
    %v2082 = vrot.slane %v2069, %v2081
    %v2083 = vlaneseq
    %v2084 = vshrl.u32 %v2083, 7
    %v2085 = vsub.s32 0, %v2084
    %v2086 = vrot.slane %v2070, %v2085
    %v2087 = vsub.s32 %v2013, %v2074
    %v2088 = vsub.s32 %v2014, %v2074
    %v2089 = vsub.s32 %v2015, %v2074
    %v2090 = vsub.s32 %v2016, %v2074
    %v2091 = vsub.s32 %v2017, %v2074
    %v2092 = vsub.s32 %v2018, %v2074
    %v2093 = vsub.s32 %v2019, %v2074
    %v2094 = vsub.s32 %v2020, %v2074
    %v2095 = vsub.s32 %v2021, %v2078
    %v2096 = vsub.s32 %v2022, %v2078
    %v2097 = vsub.s32 %v2023, %v2078
    %v2098 = vsub.s32 %v2024, %v2078
    %v2099 = vsub.s32 %v2025, %v2078
    %v2100 = vsub.s32 %v2026, %v2078
    %v2101 = vsub.s32 %v2027, %v2078
    %v2102 = vsub.s32 %v2028, %v2078
    %v2103 = vsub.s32 %v2029, %v2082
    %v2104 = vsub.s32 %v2030, %v2082
    %v2105 = vsub.s32 %v2031, %v2082
    %v2106 = vsub.s32 %v2032, %v2082
    %v2107 = vsub.s32 %v2033, %v2082
    %v2108 = vsub.s32 %v2034, %v2082
    %v2109 = vsub.s32 %v2035, %v2082
    %v2110 = vsub.s32 %v2036, %v2082
    %v2111 = vsub.s32 %v2037, %v2086
    %v2112 = vsub.s32 %v2038, %v2086
    %v2113 = vsub.s32 %v2039, %v2086
    %v2114 = vsub.s32 %v2040, %v2086
    %v2115 = vsub.s32 %v2041, %v2086
    %v2116 = vsub.s32 %v2042, %v2086
    %v2117 = vsub.s32 %v2043, %v2086
    %v2118 = vsub.s32 %v2044, %v2086
    %v2119 = vcvt.s32.f32 %v2087
    %v2120 = vcvt.s32.f32 %v2088
    %v2121 = vcvt.s32.f32 %v2089
    %v2122 = vcvt.s32.f32 %v2090
    %v2123 = vcvt.s32.f32 %v2091
    %v2124 = vcvt.s32.f32 %v2092
    %v2125 = vcvt.s32.f32 %v2093
    %v2126 = vcvt.s32.f32 %v2094
    %v2127 = vcvt.s32.f32 %v2095
    %v2128 = vcvt.s32.f32 %v2096
    %v2129 = vcvt.s32.f32 %v2097
    %v2130 = vcvt.s32.f32 %v2098
    %v2131 = vcvt.s32.f32 %v2099
    %v2132 = vcvt.s32.f32 %v2100
    %v2133 = vcvt.s32.f32 %v2101
    %v2134 = vcvt.s32.f32 %v2102
    %v2135 = vcvt.s32.f32 %v2103
    %v2136 = vcvt.s32.f32 %v2104
    %v2137 = vcvt.s32.f32 %v2105
    %v2138 = vcvt.s32.f32 %v2106
    %v2139 = vcvt.s32.f32 %v2107
    %v2140 = vcvt.s32.f32 %v2108
    %v2141 = vcvt.s32.f32 %v2109
    %v2142 = vcvt.s32.f32 %v2110
    %v2143 = vcvt.s32.f32 %v2111
    %v2144 = vcvt.s32.f32 %v2112
    %v2145 = vcvt.s32.f32 %v2113
    %v2146 = vcvt.s32.f32 %v2114
    %v2147 = vcvt.s32.f32 %v2115
    %v2148 = vcvt.s32.f32 %v2116
    %v2149 = vcvt.s32.f32 %v2117
    %v2150 = vcvt.s32.f32 %v2118
    %v2153 = vunpack.c.l.s4 1966171168
    %v2154 = vunpack.c.0.s8 %v2153
    %v2155 = vlaneseq
    %v2156 = vshrl.u32 %v2155, 7
    %v2157 = vsub.s32 %v2154, %v2156
    %v2158 = vrot.slane %v135, %v2157
    %v2159 = vcombine.high %v2158, %v2158
    %v2161 = vunpack.c.l.s4 1966171168
    %v2162 = vunpack.c.0.s8 %v2161
    %v2163 = vlaneseq
    %v2164 = vshrl.u32 %v2163, 7
    %v2165 = vsub.s32 %v2162, %v2164
    %v2166 = vrot.slane %v2158, %v2165
    %v2168 = vunpack.c.l.s4 1966171168
    %v2169 = vunpack.c.0.s8 %v2168
    %v2170 = vlaneseq
    %v2171 = vshrl.u32 %v2170, 7
    %v2172 = vsub.s32 %v2169, %v2171
    %v2173 = vrot.slane %v2159, %v2172
    %v2174 = vcombine.high %v2166, %v2166
    %v2175 = vcombine.high %v2173, %v2173
    %v2176 = vlaneseq
    %v2177 = vshrl.u32 %v2176, 7
    %v2178 = vsub.s32 0, %v2177
    %v2179 = vrot.slane %v2166, %v2178
    %v2180 = vlaneseq
    %v2181 = vshrl.u32 %v2180, 7
    %v2182 = vsub.s32 0, %v2181
    %v2183 = vrot.slane %v2173, %v2182
    %v2184 = vlaneseq
    %v2185 = vshrl.u32 %v2184, 7
    %v2186 = vsub.s32 0, %v2185
    %v2187 = vrot.slane %v2174, %v2186
    %v2188 = vlaneseq
    %v2189 = vshrl.u32 %v2188, 7
    %v2190 = vsub.s32 0, %v2189
    %v2191 = vrot.slane %v2175, %v2190
    %v2196 = vmul.f32 %v2119, %v2179
    %v2197 = vmul.f32 %v2120, %v2179
    %v2198 = vmul.f32 %v2121, %v2179
    %v2199 = vmul.f32 %v2122, %v2179
    %v2200 = vmul.f32 %v2123, %v2179
    %v2201 = vmul.f32 %v2124, %v2179
    %v2202 = vmul.f32 %v2125, %v2179
    %v2203 = vmul.f32 %v2126, %v2179
    %v2204 = vmul.f32 %v2127, %v2183
    %v2205 = vmul.f32 %v2128, %v2183
    %v2206 = vmul.f32 %v2129, %v2183
    %v2207 = vmul.f32 %v2130, %v2183
    %v2208 = vmul.f32 %v2131, %v2183
    %v2209 = vmul.f32 %v2132, %v2183
    %v2210 = vmul.f32 %v2133, %v2183
    %v2211 = vmul.f32 %v2134, %v2183
    %v2212 = vmul.f32 %v2135, %v2187
    %v2213 = vmul.f32 %v2136, %v2187
    %v2214 = vmul.f32 %v2137, %v2187
    %v2215 = vmul.f32 %v2138, %v2187
    %v2216 = vmul.f32 %v2139, %v2187
    %v2217 = vmul.f32 %v2140, %v2187
    %v2218 = vmul.f32 %v2141, %v2187
    %v2219 = vmul.f32 %v2142, %v2187
    %v2220 = vmul.f32 %v2143, %v2191
    %v2221 = vmul.f32 %v2144, %v2191
    %v2222 = vmul.f32 %v2145, %v2191
    %v2223 = vmul.f32 %v2146, %v2191
    %v2224 = vmul.f32 %v2147, %v2191
    %v2225 = vmul.f32 %v2148, %v2191
    %v2226 = vmul.f32 %v2149, %v2191
    %v2227 = vmul.f32 %v2150, %v2191
    %v2228 = vpack.c.bf16 %v2197, %v2196
    %v2229 = vpack.c.bf16 %v2199, %v2198
    %v2230 = vpack.c.bf16 %v2201, %v2200
    %v2231 = vpack.c.bf16 %v2203, %v2202
    %v2232 = vpack.c.bf16 %v2205, %v2204
    %v2233 = vpack.c.bf16 %v2207, %v2206
    %v2234 = vpack.c.bf16 %v2209, %v2208
    %v2235 = vpack.c.bf16 %v2211, %v2210
    %v2236 = vpack.c.bf16 %v2213, %v2212
    %v2237 = vpack.c.bf16 %v2215, %v2214
    %v2238 = vpack.c.bf16 %v2217, %v2216
    %v2239 = vpack.c.bf16 %v2219, %v2218
    %v2240 = vpack.c.bf16 %v2221, %v2220
    %v2241 = vpack.c.bf16 %v2223, %v2222
    %v2242 = vpack.c.bf16 %v2225, %v2224
    %v2243 = vpack.c.bf16 %v2227, %v2226
    %v2244 = vlaneseq
    %v2245 = vshrl.u32 %v2244, 7
    %v2246 = vsub.s32 6, %v2245
    %v2247 = vrot.slane %v137, %v2246
    %2248 = vmatprep.subr.bf16.mxu0 0
    %2249 = vmatpush1.bf16.msra.mxu0 %v2228
    %2250 = vmatprep.subr.bf16.mxu0 0
    %2251 = vmatpush1.bf16.msra.mxu0 %v2229
    %2252 = vmatprep.subr.bf16.mxu0 0
    %2253 = vmatpush1.bf16.msra.mxu0 %v2230
    %2254 = vmatprep.subr.bf16.mxu0 0
    %2255 = vmatpush1.bf16.msra.mxu0 %v2231
    %2256 = vmatprep.subr.bf16.mxu0 0
    %2257 = vmatpush1.bf16.msra.mxu0 %v2232
    %2258 = vmatprep.subr.bf16.mxu0 0
    %2259 = vmatpush1.bf16.msra.mxu0 %v2233
    %2260 = vmatprep.subr.bf16.mxu0 0
    %2261 = vmatpush1.bf16.msra.mxu0 %v2234
    %2262 = vmatprep.subr.bf16.mxu0 0
    %2263 = vmatpush1.bf16.msra.mxu0 %v2235
    %2264 = vmatprep.subr.bf16.mxu0 0
    %2265 = vmatpush1.bf16.msra.mxu0 %v2236
    %2266 = vmatprep.subr.bf16.mxu0 0
    %2267 = vmatpush1.bf16.msra.mxu0 %v2237
    %2268 = vmatprep.subr.bf16.mxu0 0
    %2269 = vmatpush1.bf16.msra.mxu0 %v2238
    %2270 = vmatprep.subr.bf16.mxu0 0
    %2271 = vmatpush1.bf16.msra.mxu0 %v2239
    %2272 = vmatprep.subr.bf16.mxu0 0
    %2273 = vmatpush1.bf16.msra.mxu0 %v2240
    %2274 = vmatprep.subr.bf16.mxu0 0
    %2275 = vmatpush1.bf16.msra.mxu0 %v2241
    %2276 = vmatprep.subr.bf16.mxu0 0
    %2277 = vmatpush1.bf16.msra.mxu0 %v2242
    %2278 = vmatprep.subr.bf16.mxu0 0
    %2279 = vmatpush1.bf16.msra.mxu0 %v2243
    %2280 = vmatprep.mubr.bf16.mxu0 %v379
    %2281 = vmatmul.mubr.bf16.gmra.mrb[0].mxu0 %v378
    %v2282 = vpop.f32.mrb[0].mxu0
    %v2283 = vadd.f32 %v2247, %v2282
    %v2284 = vpop.f32.mrb[0].mxu0
    %v2285 = vpop.f32.mrb[0].mxu0
    %v2286 = vadd.f32 %v2247, %v2285
    %v2287 = vpop.f32.mrb[0].mxu0
    %2288 = vdwg.mxu0
    %s2289 = scalar_lea.vmem [#allocation11], 96
    %2290 = vst.msk [vmem:[%s2289] sm:$0xff] %vm423, %v2283
    %2291 = vst.msk [vmem:[%s2289 + $0x8] sm:$0xff] %vm423, %v2286
    %v2292 = vshra.s32 %v88, 28
    %v2293 = vshra.s32 %v89, 28
    %v2294 = vshra.s32 %v90, 28
    %v2295 = vshra.s32 %v91, 28
    %v2296 = vshra.s32 %v92, 28
    %v2297 = vshra.s32 %v93, 28
    %v2298 = vshra.s32 %v94, 28
    %v2299 = vshra.s32 %v95, 28
    %v2300 = vshra.s32 %v96, 28
    %v2301 = vshra.s32 %v97, 28
    %v2302 = vshra.s32 %v98, 28
    %v2303 = vshra.s32 %v99, 28
    %v2304 = vshra.s32 %v100, 28
    %v2305 = vshra.s32 %v101, 28
    %v2306 = vshra.s32 %v102, 28
    %v2307 = vshra.s32 %v103, 28
    %v2308 = vshra.s32 %v104, 28
    %v2309 = vshra.s32 %v105, 28
    %v2310 = vshra.s32 %v106, 28
    %v2311 = vshra.s32 %v107, 28
    %v2312 = vshra.s32 %v108, 28
    %v2313 = vshra.s32 %v109, 28
    %v2314 = vshra.s32 %v110, 28
    %v2315 = vshra.s32 %v111, 28
    %v2316 = vshra.s32 %v112, 28
    %v2317 = vshra.s32 %v113, 28
    %v2318 = vshra.s32 %v114, 28
    %v2319 = vshra.s32 %v115, 28
    %v2320 = vshra.s32 %v116, 28
    %v2321 = vshra.s32 %v117, 28
    %v2322 = vshra.s32 %v118, 28
    %v2323 = vshra.s32 %v119, 28
    %v2324 = vand.u32 %v2292, 15
    %v2325 = vand.u32 %v2293, 15
    %v2326 = vand.u32 %v2294, 15
    %v2327 = vand.u32 %v2295, 15
    %v2328 = vand.u32 %v2296, 15
    %v2329 = vand.u32 %v2297, 15
    %v2330 = vand.u32 %v2298, 15
    %v2331 = vand.u32 %v2299, 15
    %v2332 = vand.u32 %v2300, 15
    %v2333 = vand.u32 %v2301, 15
    %v2334 = vand.u32 %v2302, 15
    %v2335 = vand.u32 %v2303, 15
    %v2336 = vand.u32 %v2304, 15
    %v2337 = vand.u32 %v2305, 15
    %v2338 = vand.u32 %v2306, 15
    %v2339 = vand.u32 %v2307, 15
    %v2340 = vand.u32 %v2308, 15
    %v2341 = vand.u32 %v2309, 15
    %v2342 = vand.u32 %v2310, 15
    %v2343 = vand.u32 %v2311, 15
    %v2344 = vand.u32 %v2312, 15
    %v2345 = vand.u32 %v2313, 15
    %v2346 = vand.u32 %v2314, 15
    %v2347 = vand.u32 %v2315, 15
    %v2348 = vand.u32 %v2316, 15
    %v2349 = vand.u32 %v2317, 15
    %v2350 = vand.u32 %v2318, 15
    %v2351 = vand.u32 %v2319, 15
    %v2352 = vand.u32 %v2320, 15
    %v2353 = vand.u32 %v2321, 15
    %v2354 = vand.u32 %v2322, 15
    %v2355 = vand.u32 %v2323, 15
    %v2356 = vshra.s32 %v120, 28
    %v2357 = vand.u32 %v2356, 15
    %v2359 = vunpack.c.l.s4 1966171168
    %v2360 = vunpack.c.0.s8 %v2359
    %v2361 = vlaneseq
    %v2362 = vshrl.u32 %v2361, 7
    %v2363 = vsub.s32 %v2360, %v2362
    %v2364 = vrot.slane %v2357, %v2363
    %v2365 = vcombine.high %v2364, %v2364
    %v2367 = vunpack.c.l.s4 1966171168
    %v2368 = vunpack.c.0.s8 %v2367
    %v2369 = vlaneseq
    %v2370 = vshrl.u32 %v2369, 7
    %v2371 = vsub.s32 %v2368, %v2370
    %v2372 = vrot.slane %v2364, %v2371
    %v2374 = vunpack.c.l.s4 1966171168
    %v2375 = vunpack.c.0.s8 %v2374
    %v2376 = vlaneseq
    %v2377 = vshrl.u32 %v2376, 7
    %v2378 = vsub.s32 %v2375, %v2377
    %v2379 = vrot.slane %v2365, %v2378
    %v2380 = vcombine.high %v2372, %v2372
    %v2381 = vcombine.high %v2379, %v2379
    %v2382 = vlaneseq
    %v2383 = vshrl.u32 %v2382, 7
    %v2384 = vsub.s32 0, %v2383
    %v2385 = vrot.slane %v2372, %v2384
    %v2386 = vlaneseq
    %v2387 = vshrl.u32 %v2386, 7
    %v2388 = vsub.s32 0, %v2387
    %v2389 = vrot.slane %v2379, %v2388
    %v2390 = vlaneseq
    %v2391 = vshrl.u32 %v2390, 7
    %v2392 = vsub.s32 0, %v2391
    %v2393 = vrot.slane %v2380, %v2392
    %v2394 = vlaneseq
    %v2395 = vshrl.u32 %v2394, 7
    %v2396 = vsub.s32 0, %v2395
    %v2397 = vrot.slane %v2381, %v2396
    %v2398 = vsub.s32 %v2324, %v2385
    %v2399 = vsub.s32 %v2325, %v2385
    %v2400 = vsub.s32 %v2326, %v2385
    %v2401 = vsub.s32 %v2327, %v2385
    %v2402 = vsub.s32 %v2328, %v2385
    %v2403 = vsub.s32 %v2329, %v2385
    %v2404 = vsub.s32 %v2330, %v2385
    %v2405 = vsub.s32 %v2331, %v2385
    %v2406 = vsub.s32 %v2332, %v2389
    %v2407 = vsub.s32 %v2333, %v2389
    %v2408 = vsub.s32 %v2334, %v2389
    %v2409 = vsub.s32 %v2335, %v2389
    %v2410 = vsub.s32 %v2336, %v2389
    %v2411 = vsub.s32 %v2337, %v2389
    %v2412 = vsub.s32 %v2338, %v2389
    %v2413 = vsub.s32 %v2339, %v2389
    %v2414 = vsub.s32 %v2340, %v2393
    %v2415 = vsub.s32 %v2341, %v2393
    %v2416 = vsub.s32 %v2342, %v2393
    %v2417 = vsub.s32 %v2343, %v2393
    %v2418 = vsub.s32 %v2344, %v2393
    %v2419 = vsub.s32 %v2345, %v2393
    %v2420 = vsub.s32 %v2346, %v2393
    %v2421 = vsub.s32 %v2347, %v2393
    %v2422 = vsub.s32 %v2348, %v2397
    %v2423 = vsub.s32 %v2349, %v2397
    %v2424 = vsub.s32 %v2350, %v2397
    %v2425 = vsub.s32 %v2351, %v2397
    %v2426 = vsub.s32 %v2352, %v2397
    %v2427 = vsub.s32 %v2353, %v2397
    %v2428 = vsub.s32 %v2354, %v2397
    %v2429 = vsub.s32 %v2355, %v2397
    %v2430 = vcvt.s32.f32 %v2398
    %v2431 = vcvt.s32.f32 %v2399
    %v2432 = vcvt.s32.f32 %v2400
    %v2433 = vcvt.s32.f32 %v2401
    %v2434 = vcvt.s32.f32 %v2402
    %v2435 = vcvt.s32.f32 %v2403
    %v2436 = vcvt.s32.f32 %v2404
    %v2437 = vcvt.s32.f32 %v2405
    %v2438 = vcvt.s32.f32 %v2406
    %v2439 = vcvt.s32.f32 %v2407
    %v2440 = vcvt.s32.f32 %v2408
    %v2441 = vcvt.s32.f32 %v2409
    %v2442 = vcvt.s32.f32 %v2410
    %v2443 = vcvt.s32.f32 %v2411
    %v2444 = vcvt.s32.f32 %v2412
    %v2445 = vcvt.s32.f32 %v2413
    %v2446 = vcvt.s32.f32 %v2414
    %v2447 = vcvt.s32.f32 %v2415
    %v2448 = vcvt.s32.f32 %v2416
    %v2449 = vcvt.s32.f32 %v2417
    %v2450 = vcvt.s32.f32 %v2418
    %v2451 = vcvt.s32.f32 %v2419
    %v2452 = vcvt.s32.f32 %v2420
    %v2453 = vcvt.s32.f32 %v2421
    %v2454 = vcvt.s32.f32 %v2422
    %v2455 = vcvt.s32.f32 %v2423
    %v2456 = vcvt.s32.f32 %v2424
    %v2457 = vcvt.s32.f32 %v2425
    %v2458 = vcvt.s32.f32 %v2426
    %v2459 = vcvt.s32.f32 %v2427
    %v2460 = vcvt.s32.f32 %v2428
    %v2461 = vcvt.s32.f32 %v2429
    %v2464 = vunpack.c.l.s4 1966171168
    %v2465 = vunpack.c.0.s8 %v2464
    %v2466 = vlaneseq
    %v2467 = vshrl.u32 %v2466, 7
    %v2468 = vsub.s32 %v2465, %v2467
    %v2469 = vrot.slane %v136, %v2468
    %v2470 = vcombine.high %v2469, %v2469
    %v2472 = vunpack.c.l.s4 1966171168
    %v2473 = vunpack.c.0.s8 %v2472
    %v2474 = vlaneseq
    %v2475 = vshrl.u32 %v2474, 7
    %v2476 = vsub.s32 %v2473, %v2475
    %v2477 = vrot.slane %v2469, %v2476
    %v2479 = vunpack.c.l.s4 1966171168
    %v2480 = vunpack.c.0.s8 %v2479
    %v2481 = vlaneseq
    %v2482 = vshrl.u32 %v2481, 7
    %v2483 = vsub.s32 %v2480, %v2482
    %v2484 = vrot.slane %v2470, %v2483
    %v2485 = vcombine.high %v2477, %v2477
    %v2486 = vcombine.high %v2484, %v2484
    %v2487 = vlaneseq
    %v2488 = vshrl.u32 %v2487, 7
    %v2489 = vsub.s32 0, %v2488
    %v2490 = vrot.slane %v2477, %v2489
    %v2491 = vlaneseq
    %v2492 = vshrl.u32 %v2491, 7
    %v2493 = vsub.s32 0, %v2492
    %v2494 = vrot.slane %v2484, %v2493
    %v2495 = vlaneseq
    %v2496 = vshrl.u32 %v2495, 7
    %v2497 = vsub.s32 0, %v2496
    %v2498 = vrot.slane %v2485, %v2497
    %v2499 = vlaneseq
    %v2500 = vshrl.u32 %v2499, 7
    %v2501 = vsub.s32 0, %v2500
    %v2502 = vrot.slane %v2486, %v2501
    %v2507 = vmul.f32 %v2430, %v2490
    %v2508 = vmul.f32 %v2431, %v2490
    %v2509 = vmul.f32 %v2432, %v2490
    %v2510 = vmul.f32 %v2433, %v2490
    %v2511 = vmul.f32 %v2434, %v2490
    %v2512 = vmul.f32 %v2435, %v2490
    %v2513 = vmul.f32 %v2436, %v2490
    %v2514 = vmul.f32 %v2437, %v2490
    %v2515 = vmul.f32 %v2438, %v2494
    %v2516 = vmul.f32 %v2439, %v2494
    %v2517 = vmul.f32 %v2440, %v2494
    %v2518 = vmul.f32 %v2441, %v2494
    %v2519 = vmul.f32 %v2442, %v2494
    %v2520 = vmul.f32 %v2443, %v2494
    %v2521 = vmul.f32 %v2444, %v2494
    %v2522 = vmul.f32 %v2445, %v2494
    %v2523 = vmul.f32 %v2446, %v2498
    %v2524 = vmul.f32 %v2447, %v2498
    %v2525 = vmul.f32 %v2448, %v2498
    %v2526 = vmul.f32 %v2449, %v2498
    %v2527 = vmul.f32 %v2450, %v2498
    %v2528 = vmul.f32 %v2451, %v2498
    %v2529 = vmul.f32 %v2452, %v2498
    %v2530 = vmul.f32 %v2453, %v2498
    %v2531 = vmul.f32 %v2454, %v2502
    %v2532 = vmul.f32 %v2455, %v2502
    %v2533 = vmul.f32 %v2456, %v2502
    %v2534 = vmul.f32 %v2457, %v2502
    %v2535 = vmul.f32 %v2458, %v2502
    %v2536 = vmul.f32 %v2459, %v2502
    %v2537 = vmul.f32 %v2460, %v2502
    %v2538 = vmul.f32 %v2461, %v2502
    %v2539 = vpack.c.bf16 %v2508, %v2507
    %v2540 = vpack.c.bf16 %v2510, %v2509
    %v2541 = vpack.c.bf16 %v2512, %v2511
    %v2542 = vpack.c.bf16 %v2514, %v2513
    %v2543 = vpack.c.bf16 %v2516, %v2515
    %v2544 = vpack.c.bf16 %v2518, %v2517
    %v2545 = vpack.c.bf16 %v2520, %v2519
    %v2546 = vpack.c.bf16 %v2522, %v2521
    %v2547 = vpack.c.bf16 %v2524, %v2523
    %v2548 = vpack.c.bf16 %v2526, %v2525
    %v2549 = vpack.c.bf16 %v2528, %v2527
    %v2550 = vpack.c.bf16 %v2530, %v2529
    %v2551 = vpack.c.bf16 %v2532, %v2531
    %v2552 = vpack.c.bf16 %v2534, %v2533
    %v2553 = vpack.c.bf16 %v2536, %v2535
    %v2554 = vpack.c.bf16 %v2538, %v2537
    %v2555 = vlaneseq
    %v2556 = vshrl.u32 %v2555, 7
    %v2557 = vsub.s32 7, %v2556
    %v2558 = vrot.slane %v137, %v2557
    %2559 = vmatprep.subr.bf16.mxu0 0
    %2560 = vmatpush1.bf16.msra.mxu0 %v2539
    %2561 = vmatprep.subr.bf16.mxu0 0
    %2562 = vmatpush1.bf16.msra.mxu0 %v2540
    %2563 = vmatprep.subr.bf16.mxu0 0
    %2564 = vmatpush1.bf16.msra.mxu0 %v2541
    %2565 = vmatprep.subr.bf16.mxu0 0
    %2566 = vmatpush1.bf16.msra.mxu0 %v2542
    %2567 = vmatprep.subr.bf16.mxu0 0
    %2568 = vmatpush1.bf16.msra.mxu0 %v2543
    %2569 = vmatprep.subr.bf16.mxu0 0
    %2570 = vmatpush1.bf16.msra.mxu0 %v2544
    %2571 = vmatprep.subr.bf16.mxu0 0
    %2572 = vmatpush1.bf16.msra.mxu0 %v2545
    %2573 = vmatprep.subr.bf16.mxu0 0
    %2574 = vmatpush1.bf16.msra.mxu0 %v2546
    %2575 = vmatprep.subr.bf16.mxu0 0
    %2576 = vmatpush1.bf16.msra.mxu0 %v2547
    %2577 = vmatprep.subr.bf16.mxu0 0
    %2578 = vmatpush1.bf16.msra.mxu0 %v2548
    %2579 = vmatprep.subr.bf16.mxu0 0
    %2580 = vmatpush1.bf16.msra.mxu0 %v2549
    %2581 = vmatprep.subr.bf16.mxu0 0
    %2582 = vmatpush1.bf16.msra.mxu0 %v2550
    %2583 = vmatprep.subr.bf16.mxu0 0
    %2584 = vmatpush1.bf16.msra.mxu0 %v2551
    %2585 = vmatprep.subr.bf16.mxu0 0
    %2586 = vmatpush1.bf16.msra.mxu0 %v2552
    %2587 = vmatprep.subr.bf16.mxu0 0
    %2588 = vmatpush1.bf16.msra.mxu0 %v2553
    %2589 = vmatprep.subr.bf16.mxu0 0
    %2590 = vmatpush1.bf16.msra.mxu0 %v2554
    %2591 = vmatprep.mubr.bf16.mxu0 %v379
    %2592 = vmatmul.mubr.bf16.gmra.mrb[0].mxu0 %v378
    %v2593 = vpop.f32.mrb[0].mxu0
    %v2594 = vadd.f32 %v2558, %v2593
    %v2595 = vpop.f32.mrb[0].mxu0
    %v2596 = vpop.f32.mrb[0].mxu0
    %v2597 = vadd.f32 %v2558, %v2596
    %v2598 = vpop.f32.mrb[0].mxu0
    %2599 = vdwg.mxu0
    %s2600 = scalar_lea.vmem [#allocation11], 112
    %2601 = vst.msk [vmem:[%s2600] sm:$0xff] %vm423, %v2594
    %2602 = vst.msk [vmem:[%s2600 + $0x8] sm:$0xff] %vm423, %v2597
    // Predicated region
    $region42: #{tpu_custom_call.1} parent=1 // pred_check
      _
    $region43: #{tpu_custom_call.1} parent=1 // pred_check_branch
      %2604 = sbr.rel (0) target = $region45
    $region44: #{tpu_custom_call.1} parent=1 // pred_region
      %s2606 = ssub.s32 2048, 2048
      %2607 = vsyncadd [#allocation4], %s2606
      %s2608 = sshll.u32 [#allocation11], 4
      %s2609 = int_to_ptr.vmem [resolvable:$true] %s2608
      %2614 = dma.vmem_to_hbm [thread:$0]  %s2609, 2048, %s5, [#allocation4], 128, 128, 8
    $region45: #{tpu_custom_call.1} parent=1 // pred_fallthru
      _
    // Predicated region
    $region46: #{tpu_custom_call.1} parent=1 // pred_check
      _
    $region47: #{tpu_custom_call.1} parent=1 // pred_check_branch
      %2616 = sbr.rel (0) target = $region49
    $region48: #{tpu_custom_call.1} parent=1 // pred_region
      %2617 = dma.done [#allocation4], 2048
    $region49: #{tpu_custom_call.1} parent=1 // pred_fallthru
      _
    %2618 = vsyncpa [#allocation3], 1
    %2619 = vsyncpa [#allocation6], 1
    %2620 = vsyncpa [#allocation9], 1
    %2621 = vsyncpa [#allocation4], 1

</llo_original>
